<compile_context>
chip_gen: v7x
topology: tpu7x:2x2x1
jax: 0.10.0
libtpu: 0.0.40
codegen_flags: <defaults>
</compile_context>

<pallas_src>
import math

import jax
import jax.numpy as jnp
from jax.experimental import pallas as pl

# ----------------------------- model config (small) -------------------------
IN_CH = 4
IMG = 16
PATCH = 8
DIM = 32
FF_DIM = 64
NUM_HEADS = 4
NUM_LAYERS = 2
NUM_CLASSES = 10
GRID_H = IMG // PATCH
GRID_W = IMG // PATCH
NUM_PATCH = GRID_H * GRID_W
SEQ_LEN = NUM_PATCH + 1                 # +1 class token
HEAD_DIM = DIM // NUM_HEADS
PATCH_K = IN_CH * PATCH * PATCH         # im2col inner dim
PATCH_K_AUG = PATCH_K + 8               # + class-token selector col, x8 padded
QKV_W = 3 * DIM                         # fused (per-head interleaved) qkv width


# ----------------------- parameter-slab layout (static) ----------------------
def _make_layout(entries):
    offs, total = {}, 0
    for name, rows in entries:
        offs[name] = (total, rows)
        total += ((rows + 7) // 8) * 8          # 8-sublane aligned entries
    return offs, total


_ENTRIES32 = [('pwa', PATCH_K_AUG), ('posb', SEQ_LEN)]
for _l in range(NUM_LAYERS):
    _ENTRIES32 += [(f'ln1_g_{_l}', 1), (f'ln1_b_{_l}', 1),
                   (f'wo_{_l}', DIM), (f'bo_{_l}', 1),
                   (f'ln2_g_{_l}', 1), (f'ln2_b_{_l}', 1),
                   (f'w2_{_l}', QKV_W), (f'b2_{_l}', 1)]       # w2 zero-padded to 96 rows
_ENTRIES32 += [('norm_g', 1), ('norm_b', 1), ('fcw', DIM), ('fcb', 1)]
OFF32, TOT32 = _make_layout(_ENTRIES32)

_ENTRIES96 = []
for _l in range(NUM_LAYERS):
    _ENTRIES96 += [(f'wqkv_{_l}', DIM), (f'bqkv_{_l}', 1),
                   (f'w1_{_l}', DIM), (f'b1_{_l}', 1)]         # w1/b1 zero-padded to 96 cols
OFF96, TOT96 = _make_layout(_ENTRIES96)


# ----------------------------- kernel helpers -------------------------------
def _layernorm(x, gamma, beta, eps=1e-6):
    mu = jnp.mean(x, axis=-1, keepdims=True)
    var = jnp.mean((x - mu) ** 2, axis=-1, keepdims=True)
    return (x - mu) * jax.lax.rsqrt(var + eps) * gamma + beta


def _gelu_exact(x):
    # matches torch.nn.functional.gelu default (erf-based)
    return 0.5 * x * (1.0 + jax.lax.erf(x * (1.0 / math.sqrt(2.0))))


# ----------------------------- fused ViT kernel ------------------------------
def vit_kernel(xpa_ref, s32_ref, s96_ref, o_ref):
    f32 = jnp.float32
    B = o_ref.shape[0]
    N = B * SEQ_LEN
    HN = NUM_HEADS * N
    qkv_hd = 3 * HEAD_DIM

    def p32(name):
        off, rows = OFF32[name]
        return s32_ref[off:off + rows, :]

    def p96(name):
        off, rows = OFF96[name]
        return s96_ref[off:off + rows, :]

    # ---- patch embedding + class token + positional embedding: ONE matmul ----
    # xpa row (b, 0) is a one-hot selector of the class-token row of `pwa`;
    # rows (b, 1..) are im2col patch rows.  `posb` carries pos_emb (plus the
    # conv bias on the patch rows), so no scratch buffer / masked row stores.
    posb = p32('posb')                                           # (S, D)
    x = (jnp.dot(xpa_ref[...], p32('pwa'), preferred_element_type=f32)
         + jnp.concatenate([posb] * B, axis=0))                  # (B*S, D)

    # ---- head+batch block-diagonal additive bias, built in-kernel ----------
    # Flattened score rows are ordered (head, batch, seq); two rows interact
    # iff they share head AND batch element, i.e. same index // SEQ_LEN.  The
    # group id is computed as float-mul + int-cast (exact for these sizes) to
    # avoid relying on vector integer division support.
    rid = jax.lax.broadcasted_iota(jnp.int32, (HN, HN), 0)
    cid = jax.lax.broadcasted_iota(jnp.int32, (HN, HN), 1)
    inv_s = jnp.float32(1.0 / SEQ_LEN)
    rgrp = (rid.astype(f32) * inv_s).astype(jnp.int32)
    cgrp = (cid.astype(f32) * inv_s).astype(jnp.int32)
    attn_bias = jnp.where(rgrp == cgrp, 0.0, -1e30).astype(f32)

    # ---- transformer blocks (static loop; weights stay VMEM-resident) ------
    for l in range(NUM_LAYERS):
        # -- multi-head self attention: all heads in ONE masked matmul --
        h = _layernorm(x, p32(f'ln1_g_{l}'), p32(f'ln1_b_{l}'))
        qkv = (jnp.dot(h, p96(f'wqkv_{l}'), preferred_element_type=f32)
               + p96(f'bqkv_{l}'))                               # (N, 3D), per-head [q|k|v]
        qkvh = jnp.concatenate(
            [qkv[:, hh * qkv_hd:(hh + 1) * qkv_hd] for hh in range(NUM_HEADS)],
            axis=0)                                              # (H*N, 3*hd)
        qh = qkvh[:, :HEAD_DIM]                                  # 1/sqrt(hd) folded into wqkv
        kh = qkvh[:, HEAD_DIM:2 * HEAD_DIM]
        vh = qkvh[:, 2 * HEAD_DIM:]

        s = jax.lax.dot_general(qh, kh, (((1,), (1,)), ((), ())),
                                preferred_element_type=f32) + attn_bias   # (HN, HN)
        s = s - jnp.max(s, axis=-1, keepdims=True)
        e = jnp.exp(s)
        p = e * pl.reciprocal(jnp.sum(e, axis=-1, keepdims=True), approx=True)
        oh = jnp.dot(p, vh, preferred_element_type=f32)          # (HN, hd)
        h_att = jnp.concatenate(
            [oh[hh * N:(hh + 1) * N, :] for hh in range(NUM_HEADS)], axis=1)  # (N, D)
        x = x + jnp.dot(h_att, p32(f'wo_{l}'), preferred_element_type=f32) + p32(f'bo_{l}')

        # -- position-wise feed forward (fc1/fc2 zero-padded to 3D width) --
        h2 = _layernorm(x, p32(f'ln2_g_{l}'), p32(f'ln2_b_{l}'))
        f = jnp.dot(h2, p96(f'w1_{l}'), preferred_element_type=f32) + p96(f'b1_{l}')
        f = _gelu_exact(f)
        x = x + jnp.dot(f, p32(f'w2_{l}'), preferred_element_type=f32) + p32(f'b2_{l}')

    # ---- class-token rows only -> final LayerNorm -> classification head ----
    cls = jnp.concatenate([x[b * SEQ_LEN:b * SEQ_LEN + 1, :] for b in range(B)], axis=0)
    cls = _layernorm(cls, p32('norm_g'), p32('norm_b'))
    logits = jnp.dot(cls, p32('fcw'), preferred_element_type=f32) + p32('fcb')
    o_ref[...] = logits[:, :NUM_CLASSES]


# ----------------------------- full ViT forward ------------------------------
def vit_forward(x, slab32, slab96):
    B, C, H, W = x.shape
    gh, gw = H // PATCH, W // PATCH
    n_tok = B * SEQ_LEN
    hn = NUM_HEADS * n_tok

    # im2col: (B,C,H,W) -> (B, gh*gw, C*P*P), element order (c, ph, pw) to
    # match the flattened Conv2d weight.  8 extra zero columns; column PATCH_K
    # is the class-token selector of the prepended per-batch class row.
    xp = x.reshape(B, C, gh, PATCH, gw, PATCH).transpose(0, 2, 4, 1, 3, 5)
    xp = xp.reshape(B, gh * gw, PATCH_K)
    xp = jnp.pad(xp, ((0, 0), (0, 0), (0, PATCH_K_AUG - PATCH_K)))
    cls_row = jnp.zeros((B, 1, PATCH_K_AUG), xp.dtype).at[:, :, PATCH_K].set(1.0)
    xpa = jnp.concatenate([cls_row, xp], axis=1).reshape(n_tok, PATCH_K_AUG)

    flops_layer = (2 * n_tok * DIM * QKV_W          # qkv
                   + 2 * hn * HEAD_DIM * hn         # scores
                   + 2 * hn * hn * HEAD_DIM         # P @ V
                   + 2 * n_tok * DIM * DIM          # out proj
                   + 2 * n_tok * DIM * QKV_W        # fc1 (padded)
                   + 2 * n_tok * QKV_W * DIM)       # fc2 (padded)
    cost = pl.CostEstimate(
        flops=2 * n_tok * PATCH_K_AUG * DIM + NUM_LAYERS * flops_layer + 2 * B * DIM * DIM,
        transcendentals=NUM_LAYERS * (hn * hn + n_tok * QKV_W),
        bytes_accessed=4 * (n_tok * PATCH_K_AUG + TOT32 * DIM + TOT96 * QKV_W
                            + B * NUM_CLASSES))

    return pl.pallas_call(
        vit_kernel,
        out_shape=jax.ShapeDtypeStruct((B, NUM_CLASSES), jnp.float32),
        grid=(1,),
        in_specs=[
            pl.BlockSpec((n_tok, PATCH_K_AUG), lambda i: (0, 0)),
            pl.BlockSpec((TOT32, DIM), lambda i: (0, 0)),
            pl.BlockSpec((TOT96, QKV_W), lambda i: (0, 0)),
        ],
        out_specs=pl.BlockSpec((B, NUM_CLASSES), lambda i: (0, 0)),
        cost_estimate=cost,
    )(xpa, slab32, slab96)


# ----------------------------- deterministic init ----------------------------
def init_params(key):
    keys = iter(jax.random.split(key, 64))

    def xavier(shape):
        fan_in, fan_out = shape
        lim = math.sqrt(6.0 / (fan_in + fan_out))
        return jax.random.uniform(next(keys), shape, jnp.float32, -lim, lim)

    def lin_bias(shape):
        return jax.random.normal(next(keys), shape, jnp.float32) * 1e-6

    conv_lim = 1.0 / math.sqrt(PATCH_K)
    params = {
        'patch_w': jax.random.uniform(next(keys), (PATCH_K, DIM), jnp.float32,
                                      -conv_lim, conv_lim),
        'patch_b': jax.random.uniform(next(keys), (1, DIM), jnp.float32,
                                      -conv_lim, conv_lim),
        'class_token': jnp.zeros((1, DIM), jnp.float32),
        'pos_emb': jax.random.normal(next(keys), (SEQ_LEN, DIM), jnp.float32) * 0.02,
        'norm_g': jnp.ones((1, DIM), jnp.float32),
        'norm_b': jnp.zeros((1, DIM), jnp.float32),
        'fc_w': jnp.zeros((DIM, NUM_CLASSES), jnp.float32),     # torch init: 0
        'fc_b': jnp.zeros((1, NUM_CLASSES), jnp.float32),
        'blocks': [],
    }
    for _ in range(NUM_LAYERS):
        params['blocks'].append({
            'ln1_g': jnp.ones((1, DIM), jnp.float32),
            'ln1_b': jnp.zeros((1, DIM), jnp.float32),
            'wq': xavier((DIM, DIM)), 'bq': lin_bias((1, DIM)),
            'wk': xavier((DIM, DIM)), 'bk': lin_bias((1, DIM)),
            'wv': xavier((DIM, DIM)), 'bv': lin_bias((1, DIM)),
            'wo': xavier((DIM, DIM)), 'bo': lin_bias((1, DIM)),
            'ln2_g': jnp.ones((1, DIM), jnp.float32),
            'ln2_b': jnp.zeros((1, DIM), jnp.float32),
            'w1': xavier((DIM, FF_DIM)), 'b1': lin_bias((1, FF_DIM)),
            'w2': xavier((FF_DIM, DIM)), 'b2': lin_bias((1, DIM)),
        })
    return params


# ------------------ host-side (one-time) parameter packing -------------------
def _pack_slab(entries, offs, total, width, tensors):
    slab = jnp.zeros((total, width), jnp.float32)
    for name, rows in entries:
        t = jnp.asarray(tensors[name], jnp.float32)
        assert t.ndim == 2 and t.shape[0] <= rows and t.shape[1] <= width
        off, _ = offs[name]
        slab = slab.at[off:off + t.shape[0], :t.shape[1]].set(t)
    return slab


def prepare_params(params):
    """Pack all parameters into two contiguous f32 slabs (width 32 and 96)."""
    scale = 1.0 / math.sqrt(HEAD_DIM)
    t32, t96 = {}, {}

    # augmented patch-embedding weight: conv weight rows + class-token row
    t32['pwa'] = jnp.concatenate([params['patch_w'], params['class_token']], axis=0)
    # positional embedding; conv bias folded onto the patch rows (not the cls row)
    t32['posb'] = params['pos_emb'].at[1:, :].add(params['patch_b'][0])
    t32['norm_g'] = params['norm_g']
    t32['norm_b'] = params['norm_b']
    t32['fcw'] = params['fc_w']          # packer zero-pads cols 10..31
    t32['fcb'] = params['fc_b']

    for l, blk in enumerate(params['blocks']):
        t32[f'ln1_g_{l}'] = blk['ln1_g']
        t32[f'ln1_b_{l}'] = blk['ln1_b']
        t32[f'wo_{l}'] = blk['wo']
        t32[f'bo_{l}'] = blk['bo']
        t32[f'ln2_g_{l}'] = blk['ln2_g']
        t32[f'ln2_b_{l}'] = blk['ln2_b']
        t32[f'w2_{l}'] = blk['w2']       # (64, 32); slab rows 64..95 stay zero
        t32[f'b2_{l}'] = blk['b2']

        # fused QKV, columns interleaved per head as [q|k|v], with the
        # 1/sqrt(head_dim) attention scale folded into the Q columns.
        wcols, bcols = [], []
        for h in range(NUM_HEADS):
            sl = slice(h * HEAD_DIM, (h + 1) * HEAD_DIM)
            wcols += [blk['wq'][:, sl] * scale, blk['wk'][:, sl], blk['wv'][:, sl]]
            bcols += [blk['bq'][:, sl] * scale, blk['bk'][:, sl], blk['bv'][:, sl]]
        t96[f'wqkv_{l}'] = jnp.concatenate(wcols, axis=1)        # (D, 3D)
        t96[f'bqkv_{l}'] = jnp.concatenate(bcols, axis=1)        # (1, 3D)
        t96[f'w1_{l}'] = blk['w1']       # (32, 64); slab cols 64..95 stay zero
        t96[f'b1_{l}'] = blk['b1']

    slab32 = _pack_slab(_ENTRIES32, OFF32, TOT32, DIM, t32)
    slab96 = _pack_slab(_ENTRIES96, OFF96, TOT96, QKV_W, t96)
    return slab32, slab96


# ----------------------------- main ------------------------------------------
if __name__ == "__main__":
    key = jax.random.PRNGKey(0)
    pkey, xkey = jax.random.split(key)
    params = init_params(pkey)
    slab32, slab96 = prepare_params(params)
    x = jax.random.normal(xkey, (2, IN_CH, IMG, IMG), jnp.float32)

    fwd = jax.jit(vit_forward)
    out = fwd(x, slab32, slab96)
    out = jax.block_until_ready(out)
    assert out.shape == (2, NUM_CLASSES)
    assert bool(jnp.all(jnp.isfinite(out)))
    print("KERNEL_OK")
</pallas_src>

<mosaic_0001>
module attributes {stable_mosaic.version = 11 : i64} {
  func.func @vit_kernel(%arg0: i32, %arg1: memref<10x264xf32, #tpu.memory_space<vmem>>, %arg2: memref<680x32xf32, #tpu.memory_space<vmem>>, %arg3: memref<160x96xf32, #tpu.memory_space<vmem>>, %arg4: memref<2x10xf32, #tpu.memory_space<vmem>>) attributes {dimension_semantics = [#tpu.dimension_semantics<arbitrary>], iteration_bounds = array<i64: 1>, scalar_prefetch = 0 : i64, scratch_operands = 0 : i64, tpu.core_type = #tpu.core_type<tc>, window_params = [{pipeline_mode = #tpu.pipeline_mode<synchronous>, transform_indices = @transform_0, window_bounds = array<i64: 10, 264>}, {pipeline_mode = #tpu.pipeline_mode<synchronous>, transform_indices = @transform_1, window_bounds = array<i64: 680, 32>}, {pipeline_mode = #tpu.pipeline_mode<synchronous>, transform_indices = @transform_2, window_bounds = array<i64: 160, 96>}, {pipeline_mode = #tpu.pipeline_mode<synchronous>, transform_indices = @transform_3, window_bounds = array<i64: 2, 10>}]} {
    %c264 = arith.constant 264 : index
    %c0 = arith.constant 0 : index
    %0 = vector.load %arg2[%c264, %c0] : memref<680x32xf32, #tpu.memory_space<vmem>>, vector<5x32xf32>
    %c0_0 = arith.constant 0 : index
    %c0_1 = arith.constant 0 : index
    %1 = vector.load %arg1[%c0_0, %c0_1] : memref<10x264xf32, #tpu.memory_space<vmem>>, vector<10x264xf32>
    %c0_2 = arith.constant 0 : index
    %c0_3 = arith.constant 0 : index
    %2 = vector.load %arg2[%c0_2, %c0_3] : memref<680x32xf32, #tpu.memory_space<vmem>>, vector<264x32xf32>
    %cst = arith.constant dense<0.000000e+00> : vector<10x32xf32>
    %3 = tpu.matmul %1, %2, %cst {dimension_numbers = #tpu.dot_dimension_numbers<[1], [0], [0], [1], [0, 0, 1, 1], [], []>} : vector<10x264xf32>, vector<264x32xf32>, vector<10x32xf32> -> vector<10x32xf32>
    %4 = tpu.concatenate %0, %0 in 0 : vector<5x32xf32>, vector<5x32xf32> -> vector<10x32xf32>
    %5 = arith.addf %3, %4 : vector<10x32xf32>
    %6 = tpu.iota {dimensions = array<i32: 0>} : vector<40x40xi32>
    %7 = tpu.iota {dimensions = array<i32: 1>} : vector<40x40xi32>
    %8 = arith.sitofp %6 : vector<40x40xi32> to vector<40x40xf32>
    %cst_4 = arith.constant 2.000000e-01 : f32
    %9 = vector.broadcast %cst_4 : f32 to vector<40x40xf32>
    %10 = arith.mulf %8, %9 : vector<40x40xf32>
    %11 = arith.fptosi %10 : vector<40x40xf32> to vector<40x40xi32>
    %12 = arith.sitofp %7 : vector<40x40xi32> to vector<40x40xf32>
    %cst_5 = arith.constant 2.000000e-01 : f32
    %13 = vector.broadcast %cst_5 : f32 to vector<40x40xf32>
    %14 = arith.mulf %12, %13 : vector<40x40xf32>
    %15 = arith.fptosi %14 : vector<40x40xf32> to vector<40x40xi32>
    %16 = arith.cmpi eq, %11, %15 : vector<40x40xi32>
    %cst_6 = arith.constant 0.000000e+00 : f32
    %cst_7 = arith.constant -1.000000e+30 : f32
    %17 = vector.broadcast %cst_6 : f32 to vector<40x40xf32>
    %18 = vector.broadcast %cst_7 : f32 to vector<40x40xf32>
    %19 = arith.select %16, %17, %18 : vector<40x40xi1>, vector<40x40xf32>
    %c272 = arith.constant 272 : index
    %c0_8 = arith.constant 0 : index
    %20 = vector.load %arg2[%c272, %c0_8] : memref<680x32xf32, #tpu.memory_space<vmem>>, vector<1x32xf32>
    %c280 = arith.constant 280 : index
    %c0_9 = arith.constant 0 : index
    %21 = vector.load %arg2[%c280, %c0_9] : memref<680x32xf32, #tpu.memory_space<vmem>>, vector<1x32xf32>
    %cst_10 = arith.constant dense<0.000000e+00> : vector<10xf32>
    %22 = vector.multi_reduction <add>, %5, %cst_10 [1] : vector<10x32xf32> to vector<10xf32>
    %23 = vector.shape_cast %22 : vector<10xf32> to vector<10x1xf32>
    %cst_11 = arith.constant 3.200000e+01 : f32
    %24 = vector.broadcast %cst_11 : f32 to vector<10x1xf32>
    %25 = arith.divf %23, %24 : vector<10x1xf32>
    %26 = vector.broadcast %25 : vector<10x1xf32> to vector<10x32xf32>
    %27 = arith.subf %5, %26 : vector<10x32xf32>
    %28 = arith.mulf %27, %27 : vector<10x32xf32>
    %cst_12 = arith.constant dense<0.000000e+00> : vector<10xf32>
    %29 = vector.multi_reduction <add>, %28, %cst_12 [1] : vector<10x32xf32> to vector<10xf32>
    %30 = vector.shape_cast %29 : vector<10xf32> to vector<10x1xf32>
    %cst_13 = arith.constant 3.200000e+01 : f32
    %31 = vector.broadcast %cst_13 : f32 to vector<10x1xf32>
    %32 = arith.divf %30, %31 : vector<10x1xf32>
    %33 = vector.broadcast %25 : vector<10x1xf32> to vector<10x32xf32>
    %34 = arith.subf %5, %33 : vector<10x32xf32>
    %cst_14 = arith.constant 9.99999997E-7 : f32
    %35 = vector.broadcast %cst_14 : f32 to vector<10x1xf32>
    %36 = arith.addf %32, %35 : vector<10x1xf32>
    %37 = math.rsqrt %36 : vector<10x1xf32>
    %38 = vector.broadcast %37 : vector<10x1xf32> to vector<10x32xf32>
    %39 = arith.mulf %34, %38 : vector<10x32xf32>
    %40 = vector.broadcast %20 : vector<1x32xf32> to vector<10x32xf32>
    %41 = arith.mulf %39, %40 : vector<10x32xf32>
    %42 = vector.broadcast %21 : vector<1x32xf32> to vector<10x32xf32>
    %43 = arith.addf %41, %42 : vector<10x32xf32>
    %c0_15 = arith.constant 0 : index
    %c0_16 = arith.constant 0 : index
    %44 = vector.load %arg3[%c0_15, %c0_16] : memref<160x96xf32, #tpu.memory_space<vmem>>, vector<32x96xf32>
    %cst_17 = arith.constant dense<0.000000e+00> : vector<10x96xf32>
    %45 = tpu.matmul %43, %44, %cst_17 {dimension_numbers = #tpu.dot_dimension_numbers<[1], [0], [0], [1], [0, 0, 1, 1], [], []>} : vector<10x32xf32>, vector<32x96xf32>, vector<10x96xf32> -> vector<10x96xf32>
    %c32 = arith.constant 32 : index
    %c0_18 = arith.constant 0 : index
    %46 = vector.load %arg3[%c32, %c0_18] : memref<160x96xf32, #tpu.memory_space<vmem>>, vector<1x96xf32>
    %47 = vector.broadcast %46 : vector<1x96xf32> to vector<10x96xf32>
    %48 = arith.addf %45, %47 : vector<10x96xf32>
    %49 = vector.extract_strided_slice %48 {offsets = [0, 0], sizes = [10, 24], strides = [1, 1]} : vector<10x96xf32> to vector<10x24xf32>
    %50 = vector.extract_strided_slice %48 {offsets = [0, 24], sizes = [10, 24], strides = [1, 1]} : vector<10x96xf32> to vector<10x24xf32>
    %51 = vector.extract_strided_slice %48 {offsets = [0, 48], sizes = [10, 24], strides = [1, 1]} : vector<10x96xf32> to vector<10x24xf32>
    %52 = vector.extract_strided_slice %48 {offsets = [0, 72], sizes = [10, 24], strides = [1, 1]} : vector<10x96xf32> to vector<10x24xf32>
    %53 = tpu.concatenate %49, %50, %51, %52 in 0 : vector<10x24xf32>, vector<10x24xf32>, vector<10x24xf32>, vector<10x24xf32> -> vector<40x24xf32>
    %54 = vector.extract_strided_slice %53 {offsets = [0, 0], sizes = [40, 8], strides = [1, 1]} : vector<40x24xf32> to vector<40x8xf32>
    %55 = vector.extract_strided_slice %53 {offsets = [0, 8], sizes = [40, 8], strides = [1, 1]} : vector<40x24xf32> to vector<40x8xf32>
    %56 = vector.extract_strided_slice %53 {offsets = [0, 16], sizes = [40, 8], strides = [1, 1]} : vector<40x24xf32> to vector<40x8xf32>
    %cst_19 = arith.constant dense<0.000000e+00> : vector<40x40xf32>
    %57 = tpu.matmul %54, %55, %cst_19 {dimension_numbers = #tpu.dot_dimension_numbers<[1], [1], [0], [0], [0, 0, 1, 0], [], []>} : vector<40x8xf32>, vector<40x8xf32>, vector<40x40xf32> -> vector<40x40xf32>
    %58 = arith.addf %57, %19 : vector<40x40xf32>
    %cst_20 = arith.constant dense<0xFF800000> : vector<40xf32>
    %59 = vector.multi_reduction <maximumf>, %58, %cst_20 [1] : vector<40x40xf32> to vector<40xf32>
    %60 = vector.shape_cast %59 : vector<40xf32> to vector<40x1xf32>
    %61 = vector.broadcast %60 : vector<40x1xf32> to vector<40x40xf32>
    %62 = arith.subf %58, %61 : vector<40x40xf32>
    %63 = math.exp %62 : vector<40x40xf32>
    %cst_21 = arith.constant dense<0.000000e+00> : vector<40xf32>
    %64 = vector.multi_reduction <add>, %63, %cst_21 [1] : vector<40x40xf32> to vector<40xf32>
    %65 = vector.shape_cast %64 : vector<40xf32> to vector<40x1xf32>
    %66 = tpu.reciprocal %65 {approx = true} : vector<40x1xf32> -> vector<40x1xf32>
    %67 = vector.broadcast %66 : vector<40x1xf32> to vector<40x40xf32>
    %68 = arith.mulf %63, %67 : vector<40x40xf32>
    %cst_22 = arith.constant dense<0.000000e+00> : vector<40x8xf32>
    %69 = tpu.matmul %68, %56, %cst_22 {dimension_numbers = #tpu.dot_dimension_numbers<[1], [0], [0], [1], [0, 0, 1, 1], [], []>} : vector<40x40xf32>, vector<40x8xf32>, vector<40x8xf32> -> vector<40x8xf32>
    %70 = vector.extract_strided_slice %69 {offsets = [0, 0], sizes = [10, 8], strides = [1, 1]} : vector<40x8xf32> to vector<10x8xf32>
    %71 = vector.extract_strided_slice %69 {offsets = [10, 0], sizes = [10, 8], strides = [1, 1]} : vector<40x8xf32> to vector<10x8xf32>
    %72 = vector.extract_strided_slice %69 {offsets = [20, 0], sizes = [10, 8], strides = [1, 1]} : vector<40x8xf32> to vector<10x8xf32>
    %73 = vector.extract_strided_slice %69 {offsets = [30, 0], sizes = [10, 8], strides = [1, 1]} : vector<40x8xf32> to vector<10x8xf32>
    %74 = tpu.concatenate %70, %71, %72, %73 in 1 : vector<10x8xf32>, vector<10x8xf32>, vector<10x8xf32>, vector<10x8xf32> -> vector<10x32xf32>
    %c288 = arith.constant 288 : index
    %c0_23 = arith.constant 0 : index
    %75 = vector.load %arg2[%c288, %c0_23] : memref<680x32xf32, #tpu.memory_space<vmem>>, vector<32x32xf32>
    %cst_24 = arith.constant dense<0.000000e+00> : vector<10x32xf32>
    %76 = tpu.matmul %74, %75, %cst_24 {dimension_numbers = #tpu.dot_dimension_numbers<[1], [0], [0], [1], [0, 0, 1, 1], [], []>} : vector<10x32xf32>, vector<32x32xf32>, vector<10x32xf32> -> vector<10x32xf32>
    %77 = arith.addf %5, %76 : vector<10x32xf32>
    %c320 = arith.constant 320 : index
    %c0_25 = arith.constant 0 : index
    %78 = vector.load %arg2[%c320, %c0_25] : memref<680x32xf32, #tpu.memory_space<vmem>>, vector<1x32xf32>
    %79 = vector.broadcast %78 : vector<1x32xf32> to vector<10x32xf32>
    %80 = arith.addf %77, %79 : vector<10x32xf32>
    %c328 = arith.constant 328 : index
    %c0_26 = arith.constant 0 : index
    %81 = vector.load %arg2[%c328, %c0_26] : memref<680x32xf32, #tpu.memory_space<vmem>>, vector<1x32xf32>
    %c336 = arith.constant 336 : index
    %c0_27 = arith.constant 0 : index
    %82 = vector.load %arg2[%c336, %c0_27] : memref<680x32xf32, #tpu.memory_space<vmem>>, vector<1x32xf32>
    %cst_28 = arith.constant dense<0.000000e+00> : vector<10xf32>
    %83 = vector.multi_reduction <add>, %80, %cst_28 [1] : vector<10x32xf32> to vector<10xf32>
    %84 = vector.shape_cast %83 : vector<10xf32> to vector<10x1xf32>
    %cst_29 = arith.constant 3.200000e+01 : f32
    %85 = vector.broadcast %cst_29 : f32 to vector<10x1xf32>
    %86 = arith.divf %84, %85 : vector<10x1xf32>
    %87 = vector.broadcast %86 : vector<10x1xf32> to vector<10x32xf32>
    %88 = arith.subf %80, %87 : vector<10x32xf32>
    %89 = arith.mulf %88, %88 : vector<10x32xf32>
    %cst_30 = arith.constant dense<0.000000e+00> : vector<10xf32>
    %90 = vector.multi_reduction <add>, %89, %cst_30 [1] : vector<10x32xf32> to vector<10xf32>
    %91 = vector.shape_cast %90 : vector<10xf32> to vector<10x1xf32>
    %cst_31 = arith.constant 3.200000e+01 : f32
    %92 = vector.broadcast %cst_31 : f32 to vector<10x1xf32>
    %93 = arith.divf %91, %92 : vector<10x1xf32>
    %94 = vector.broadcast %86 : vector<10x1xf32> to vector<10x32xf32>
    %95 = arith.subf %80, %94 : vector<10x32xf32>
    %cst_32 = arith.constant 9.99999997E-7 : f32
    %96 = vector.broadcast %cst_32 : f32 to vector<10x1xf32>
    %97 = arith.addf %93, %96 : vector<10x1xf32>
    %98 = math.rsqrt %97 : vector<10x1xf32>
    %99 = vector.broadcast %98 : vector<10x1xf32> to vector<10x32xf32>
    %100 = arith.mulf %95, %99 : vector<10x32xf32>
    %101 = vector.broadcast %81 : vector<1x32xf32> to vector<10x32xf32>
    %102 = arith.mulf %100, %101 : vector<10x32xf32>
    %103 = vector.broadcast %82 : vector<1x32xf32> to vector<10x32xf32>
    %104 = arith.addf %102, %103 : vector<10x32xf32>
    %c40 = arith.constant 40 : index
    %c0_33 = arith.constant 0 : index
    %105 = vector.load %arg3[%c40, %c0_33] : memref<160x96xf32, #tpu.memory_space<vmem>>, vector<32x96xf32>
    %cst_34 = arith.constant dense<0.000000e+00> : vector<10x96xf32>
    %106 = tpu.matmul %104, %105, %cst_34 {dimension_numbers = #tpu.dot_dimension_numbers<[1], [0], [0], [1], [0, 0, 1, 1], [], []>} : vector<10x32xf32>, vector<32x96xf32>, vector<10x96xf32> -> vector<10x96xf32>
    %c72 = arith.constant 72 : index
    %c0_35 = arith.constant 0 : index
    %107 = vector.load %arg3[%c72, %c0_35] : memref<160x96xf32, #tpu.memory_space<vmem>>, vector<1x96xf32>
    %108 = vector.broadcast %107 : vector<1x96xf32> to vector<10x96xf32>
    %109 = arith.addf %106, %108 : vector<10x96xf32>
    %cst_36 = arith.constant 5.000000e-01 : f32
    %110 = vector.broadcast %cst_36 : f32 to vector<10x96xf32>
    %111 = arith.mulf %110, %109 : vector<10x96xf32>
    %cst_37 = arith.constant 0.707106769 : f32
    %112 = vector.broadcast %cst_37 : f32 to vector<10x96xf32>
    %113 = arith.mulf %109, %112 : vector<10x96xf32>
    %114 = math.erf %113 : vector<10x96xf32>
    %cst_38 = arith.constant 1.000000e+00 : f32
    %115 = vector.broadcast %cst_38 : f32 to vector<10x96xf32>
    %116 = arith.addf %115, %114 : vector<10x96xf32>
    %117 = arith.mulf %111, %116 : vector<10x96xf32>
    %c344 = arith.constant 344 : index
    %c0_39 = arith.constant 0 : index
    %118 = vector.load %arg2[%c344, %c0_39] : memref<680x32xf32, #tpu.memory_space<vmem>>, vector<96x32xf32>
    %cst_40 = arith.constant dense<0.000000e+00> : vector<10x32xf32>
    %119 = tpu.matmul %117, %118, %cst_40 {dimension_numbers = #tpu.dot_dimension_numbers<[1], [0], [0], [1], [0, 0, 1, 1], [], []>} : vector<10x96xf32>, vector<96x32xf32>, vector<10x32xf32> -> vector<10x32xf32>
    %120 = arith.addf %80, %119 : vector<10x32xf32>
    %c440 = arith.constant 440 : index
    %c0_41 = arith.constant 0 : index
    %121 = vector.load %arg2[%c440, %c0_41] : memref<680x32xf32, #tpu.memory_space<vmem>>, vector<1x32xf32>
    %122 = vector.broadcast %121 : vector<1x32xf32> to vector<10x32xf32>
    %123 = arith.addf %120, %122 : vector<10x32xf32>
    %c448 = arith.constant 448 : index
    %c0_42 = arith.constant 0 : index
    %124 = vector.load %arg2[%c448, %c0_42] : memref<680x32xf32, #tpu.memory_space<vmem>>, vector<1x32xf32>
    %c456 = arith.constant 456 : index
    %c0_43 = arith.constant 0 : index
    %125 = vector.load %arg2[%c456, %c0_43] : memref<680x32xf32, #tpu.memory_space<vmem>>, vector<1x32xf32>
    %cst_44 = arith.constant dense<0.000000e+00> : vector<10xf32>
    %126 = vector.multi_reduction <add>, %123, %cst_44 [1] : vector<10x32xf32> to vector<10xf32>
    %127 = vector.shape_cast %126 : vector<10xf32> to vector<10x1xf32>
    %cst_45 = arith.constant 3.200000e+01 : f32
    %128 = vector.broadcast %cst_45 : f32 to vector<10x1xf32>
    %129 = arith.divf %127, %128 : vector<10x1xf32>
    %130 = vector.broadcast %129 : vector<10x1xf32> to vector<10x32xf32>
    %131 = arith.subf %123, %130 : vector<10x32xf32>
    %132 = arith.mulf %131, %131 : vector<10x32xf32>
    %cst_46 = arith.constant dense<0.000000e+00> : vector<10xf32>
    %133 = vector.multi_reduction <add>, %132, %cst_46 [1] : vector<10x32xf32> to vector<10xf32>
    %134 = vector.shape_cast %133 : vector<10xf32> to vector<10x1xf32>
    %cst_47 = arith.constant 3.200000e+01 : f32
    %135 = vector.broadcast %cst_47 : f32 to vector<10x1xf32>
    %136 = arith.divf %134, %135 : vector<10x1xf32>
    %137 = vector.broadcast %129 : vector<10x1xf32> to vector<10x32xf32>
    %138 = arith.subf %123, %137 : vector<10x32xf32>
    %cst_48 = arith.constant 9.99999997E-7 : f32
    %139 = vector.broadcast %cst_48 : f32 to vector<10x1xf32>
    %140 = arith.addf %136, %139 : vector<10x1xf32>
    %141 = math.rsqrt %140 : vector<10x1xf32>
    %142 = vector.broadcast %141 : vector<10x1xf32> to vector<10x32xf32>
    %143 = arith.mulf %138, %142 : vector<10x32xf32>
    %144 = vector.broadcast %124 : vector<1x32xf32> to vector<10x32xf32>
    %145 = arith.mulf %143, %144 : vector<10x32xf32>
    %146 = vector.broadcast %125 : vector<1x32xf32> to vector<10x32xf32>
    %147 = arith.addf %145, %146 : vector<10x32xf32>
    %c80 = arith.constant 80 : index
    %c0_49 = arith.constant 0 : index
    %148 = vector.load %arg3[%c80, %c0_49] : memref<160x96xf32, #tpu.memory_space<vmem>>, vector<32x96xf32>
    %cst_50 = arith.constant dense<0.000000e+00> : vector<10x96xf32>
    %149 = tpu.matmul %147, %148, %cst_50 {dimension_numbers = #tpu.dot_dimension_numbers<[1], [0], [0], [1], [0, 0, 1, 1], [], []>} : vector<10x32xf32>, vector<32x96xf32>, vector<10x96xf32> -> vector<10x96xf32>
    %c112 = arith.constant 112 : index
    %c0_51 = arith.constant 0 : index
    %150 = vector.load %arg3[%c112, %c0_51] : memref<160x96xf32, #tpu.memory_space<vmem>>, vector<1x96xf32>
    %151 = vector.broadcast %150 : vector<1x96xf32> to vector<10x96xf32>
    %152 = arith.addf %149, %151 : vector<10x96xf32>
    %153 = vector.extract_strided_slice %152 {offsets = [0, 0], sizes = [10, 24], strides = [1, 1]} : vector<10x96xf32> to vector<10x24xf32>
    %154 = vector.extract_strided_slice %152 {offsets = [0, 24], sizes = [10, 24], strides = [1, 1]} : vector<10x96xf32> to vector<10x24xf32>
    %155 = vector.extract_strided_slice %152 {offsets = [0, 48], sizes = [10, 24], strides = [1, 1]} : vector<10x96xf32> to vector<10x24xf32>
    %156 = vector.extract_strided_slice %152 {offsets = [0, 72], sizes = [10, 24], strides = [1, 1]} : vector<10x96xf32> to vector<10x24xf32>
    %157 = tpu.concatenate %153, %154, %155, %156 in 0 : vector<10x24xf32>, vector<10x24xf32>, vector<10x24xf32>, vector<10x24xf32> -> vector<40x24xf32>
    %158 = vector.extract_strided_slice %157 {offsets = [0, 0], sizes = [40, 8], strides = [1, 1]} : vector<40x24xf32> to vector<40x8xf32>
    %159 = vector.extract_strided_slice %157 {offsets = [0, 8], sizes = [40, 8], strides = [1, 1]} : vector<40x24xf32> to vector<40x8xf32>
    %160 = vector.extract_strided_slice %157 {offsets = [0, 16], sizes = [40, 8], strides = [1, 1]} : vector<40x24xf32> to vector<40x8xf32>
    %cst_52 = arith.constant dense<0.000000e+00> : vector<40x40xf32>
    %161 = tpu.matmul %158, %159, %cst_52 {dimension_numbers = #tpu.dot_dimension_numbers<[1], [1], [0], [0], [0, 0, 1, 0], [], []>} : vector<40x8xf32>, vector<40x8xf32>, vector<40x40xf32> -> vector<40x40xf32>
    %162 = arith.addf %161, %19 : vector<40x40xf32>
    %cst_53 = arith.constant dense<0xFF800000> : vector<40xf32>
    %163 = vector.multi_reduction <maximumf>, %162, %cst_53 [1] : vector<40x40xf32> to vector<40xf32>
    %164 = vector.shape_cast %163 : vector<40xf32> to vector<40x1xf32>
    %165 = vector.broadcast %164 : vector<40x1xf32> to vector<40x40xf32>
    %166 = arith.subf %162, %165 : vector<40x40xf32>
    %167 = math.exp %166 : vector<40x40xf32>
    %cst_54 = arith.constant dense<0.000000e+00> : vector<40xf32>
    %168 = vector.multi_reduction <add>, %167, %cst_54 [1] : vector<40x40xf32> to vector<40xf32>
    %169 = vector.shape_cast %168 : vector<40xf32> to vector<40x1xf32>
    %170 = tpu.reciprocal %169 {approx = true} : vector<40x1xf32> -> vector<40x1xf32>
    %171 = vector.broadcast %170 : vector<40x1xf32> to vector<40x40xf32>
    %172 = arith.mulf %167, %171 : vector<40x40xf32>
    %cst_55 = arith.constant dense<0.000000e+00> : vector<40x8xf32>
    %173 = tpu.matmul %172, %160, %cst_55 {dimension_numbers = #tpu.dot_dimension_numbers<[1], [0], [0], [1], [0, 0, 1, 1], [], []>} : vector<40x40xf32>, vector<40x8xf32>, vector<40x8xf32> -> vector<40x8xf32>
    %174 = vector.extract_strided_slice %173 {offsets = [0, 0], sizes = [10, 8], strides = [1, 1]} : vector<40x8xf32> to vector<10x8xf32>
    %175 = vector.extract_strided_slice %173 {offsets = [10, 0], sizes = [10, 8], strides = [1, 1]} : vector<40x8xf32> to vector<10x8xf32>
    %176 = vector.extract_strided_slice %173 {offsets = [20, 0], sizes = [10, 8], strides = [1, 1]} : vector<40x8xf32> to vector<10x8xf32>
    %177 = vector.extract_strided_slice %173 {offsets = [30, 0], sizes = [10, 8], strides = [1, 1]} : vector<40x8xf32> to vector<10x8xf32>
    %178 = tpu.concatenate %174, %175, %176, %177 in 1 : vector<10x8xf32>, vector<10x8xf32>, vector<10x8xf32>, vector<10x8xf32> -> vector<10x32xf32>
    %c464 = arith.constant 464 : index
    %c0_56 = arith.constant 0 : index
    %179 = vector.load %arg2[%c464, %c0_56] : memref<680x32xf32, #tpu.memory_space<vmem>>, vector<32x32xf32>
    %cst_57 = arith.constant dense<0.000000e+00> : vector<10x32xf32>
    %180 = tpu.matmul %178, %179, %cst_57 {dimension_numbers = #tpu.dot_dimension_numbers<[1], [0], [0], [1], [0, 0, 1, 1], [], []>} : vector<10x32xf32>, vector<32x32xf32>, vector<10x32xf32> -> vector<10x32xf32>
    %181 = arith.addf %123, %180 : vector<10x32xf32>
    %c496 = arith.constant 496 : index
    %c0_58 = arith.constant 0 : index
    %182 = vector.load %arg2[%c496, %c0_58] : memref<680x32xf32, #tpu.memory_space<vmem>>, vector<1x32xf32>
    %183 = vector.broadcast %182 : vector<1x32xf32> to vector<10x32xf32>
    %184 = arith.addf %181, %183 : vector<10x32xf32>
    %c504 = arith.constant 504 : index
    %c0_59 = arith.constant 0 : index
    %185 = vector.load %arg2[%c504, %c0_59] : memref<680x32xf32, #tpu.memory_space<vmem>>, vector<1x32xf32>
    %c512 = arith.constant 512 : index
    %c0_60 = arith.constant 0 : index
    %186 = vector.load %arg2[%c512, %c0_60] : memref<680x32xf32, #tpu.memory_space<vmem>>, vector<1x32xf32>
    %cst_61 = arith.constant dense<0.000000e+00> : vector<10xf32>
    %187 = vector.multi_reduction <add>, %184, %cst_61 [1] : vector<10x32xf32> to vector<10xf32>
    %188 = vector.shape_cast %187 : vector<10xf32> to vector<10x1xf32>
    %cst_62 = arith.constant 3.200000e+01 : f32
    %189 = vector.broadcast %cst_62 : f32 to vector<10x1xf32>
    %190 = arith.divf %188, %189 : vector<10x1xf32>
    %191 = vector.broadcast %190 : vector<10x1xf32> to vector<10x32xf32>
    %192 = arith.subf %184, %191 : vector<10x32xf32>
    %193 = arith.mulf %192, %192 : vector<10x32xf32>
    %cst_63 = arith.constant dense<0.000000e+00> : vector<10xf32>
    %194 = vector.multi_reduction <add>, %193, %cst_63 [1] : vector<10x32xf32> to vector<10xf32>
    %195 = vector.shape_cast %194 : vector<10xf32> to vector<10x1xf32>
    %cst_64 = arith.constant 3.200000e+01 : f32
    %196 = vector.broadcast %cst_64 : f32 to vector<10x1xf32>
    %197 = arith.divf %195, %196 : vector<10x1xf32>
    %198 = vector.broadcast %190 : vector<10x1xf32> to vector<10x32xf32>
    %199 = arith.subf %184, %198 : vector<10x32xf32>
    %cst_65 = arith.constant 9.99999997E-7 : f32
    %200 = vector.broadcast %cst_65 : f32 to vector<10x1xf32>
    %201 = arith.addf %197, %200 : vector<10x1xf32>
    %202 = math.rsqrt %201 : vector<10x1xf32>
    %203 = vector.broadcast %202 : vector<10x1xf32> to vector<10x32xf32>
    %204 = arith.mulf %199, %203 : vector<10x32xf32>
    %205 = vector.broadcast %185 : vector<1x32xf32> to vector<10x32xf32>
    %206 = arith.mulf %204, %205 : vector<10x32xf32>
    %207 = vector.broadcast %186 : vector<1x32xf32> to vector<10x32xf32>
    %208 = arith.addf %206, %207 : vector<10x32xf32>
    %c120 = arith.constant 120 : index
    %c0_66 = arith.constant 0 : index
    %209 = vector.load %arg3[%c120, %c0_66] : memref<160x96xf32, #tpu.memory_space<vmem>>, vector<32x96xf32>
    %cst_67 = arith.constant dense<0.000000e+00> : vector<10x96xf32>
    %210 = tpu.matmul %208, %209, %cst_67 {dimension_numbers = #tpu.dot_dimension_numbers<[1], [0], [0], [1], [0, 0, 1, 1], [], []>} : vector<10x32xf32>, vector<32x96xf32>, vector<10x96xf32> -> vector<10x96xf32>
    %c152 = arith.constant 152 : index
    %c0_68 = arith.constant 0 : index
    %211 = vector.load %arg3[%c152, %c0_68] : memref<160x96xf32, #tpu.memory_space<vmem>>, vector<1x96xf32>
    %212 = vector.broadcast %211 : vector<1x96xf32> to vector<10x96xf32>
    %213 = arith.addf %210, %212 : vector<10x96xf32>
    %cst_69 = arith.constant 5.000000e-01 : f32
    %214 = vector.broadcast %cst_69 : f32 to vector<10x96xf32>
    %215 = arith.mulf %214, %213 : vector<10x96xf32>
    %cst_70 = arith.constant 0.707106769 : f32
    %216 = vector.broadcast %cst_70 : f32 to vector<10x96xf32>
    %217 = arith.mulf %213, %216 : vector<10x96xf32>
    %218 = math.erf %217 : vector<10x96xf32>
    %cst_71 = arith.constant 1.000000e+00 : f32
    %219 = vector.broadcast %cst_71 : f32 to vector<10x96xf32>
    %220 = arith.addf %219, %218 : vector<10x96xf32>
    %221 = arith.mulf %215, %220 : vector<10x96xf32>
    %c520 = arith.constant 520 : index
    %c0_72 = arith.constant 0 : index
    %222 = vector.load %arg2[%c520, %c0_72] : memref<680x32xf32, #tpu.memory_space<vmem>>, vector<96x32xf32>
    %cst_73 = arith.constant dense<0.000000e+00> : vector<10x32xf32>
    %223 = tpu.matmul %221, %222, %cst_73 {dimension_numbers = #tpu.dot_dimension_numbers<[1], [0], [0], [1], [0, 0, 1, 1], [], []>} : vector<10x96xf32>, vector<96x32xf32>, vector<10x32xf32> -> vector<10x32xf32>
    %224 = arith.addf %184, %223 : vector<10x32xf32>
    %c616 = arith.constant 616 : index
    %c0_74 = arith.constant 0 : index
    %225 = vector.load %arg2[%c616, %c0_74] : memref<680x32xf32, #tpu.memory_space<vmem>>, vector<1x32xf32>
    %226 = vector.broadcast %225 : vector<1x32xf32> to vector<10x32xf32>
    %227 = arith.addf %224, %226 : vector<10x32xf32>
    %228 = vector.extract_strided_slice %227 {offsets = [0, 0], sizes = [1, 32], strides = [1, 1]} : vector<10x32xf32> to vector<1x32xf32>
    %229 = vector.extract_strided_slice %227 {offsets = [5, 0], sizes = [1, 32], strides = [1, 1]} : vector<10x32xf32> to vector<1x32xf32>
    %230 = tpu.concatenate %228, %229 in 0 : vector<1x32xf32>, vector<1x32xf32> -> vector<2x32xf32>
    %c624 = arith.constant 624 : index
    %c0_75 = arith.constant 0 : index
    %231 = vector.load %arg2[%c624, %c0_75] : memref<680x32xf32, #tpu.memory_space<vmem>>, vector<1x32xf32>
    %c632 = arith.constant 632 : index
    %c0_76 = arith.constant 0 : index
    %232 = vector.load %arg2[%c632, %c0_76] : memref<680x32xf32, #tpu.memory_space<vmem>>, vector<1x32xf32>
    %cst_77 = arith.constant dense<0.000000e+00> : vector<2xf32>
    %233 = vector.multi_reduction <add>, %230, %cst_77 [1] : vector<2x32xf32> to vector<2xf32>
    %234 = vector.shape_cast %233 : vector<2xf32> to vector<2x1xf32>
    %cst_78 = arith.constant 3.200000e+01 : f32
    %235 = vector.broadcast %cst_78 : f32 to vector<2x1xf32>
    %236 = arith.divf %234, %235 : vector<2x1xf32>
    %237 = vector.broadcast %236 : vector<2x1xf32> to vector<2x32xf32>
    %238 = arith.subf %230, %237 : vector<2x32xf32>
    %239 = arith.mulf %238, %238 : vector<2x32xf32>
    %cst_79 = arith.constant dense<0.000000e+00> : vector<2xf32>
    %240 = vector.multi_reduction <add>, %239, %cst_79 [1] : vector<2x32xf32> to vector<2xf32>
    %241 = vector.shape_cast %240 : vector<2xf32> to vector<2x1xf32>
    %cst_80 = arith.constant 3.200000e+01 : f32
    %242 = vector.broadcast %cst_80 : f32 to vector<2x1xf32>
    %243 = arith.divf %241, %242 : vector<2x1xf32>
    %244 = vector.broadcast %236 : vector<2x1xf32> to vector<2x32xf32>
    %245 = arith.subf %230, %244 : vector<2x32xf32>
    %cst_81 = arith.constant 9.99999997E-7 : f32
    %246 = vector.broadcast %cst_81 : f32 to vector<2x1xf32>
    %247 = arith.addf %243, %246 : vector<2x1xf32>
    %248 = math.rsqrt %247 : vector<2x1xf32>
    %249 = vector.broadcast %248 : vector<2x1xf32> to vector<2x32xf32>
    %250 = arith.mulf %245, %249 : vector<2x32xf32>
    %251 = vector.broadcast %231 : vector<1x32xf32> to vector<2x32xf32>
    %252 = arith.mulf %250, %251 : vector<2x32xf32>
    %253 = vector.broadcast %232 : vector<1x32xf32> to vector<2x32xf32>
    %254 = arith.addf %252, %253 : vector<2x32xf32>
    %c640 = arith.constant 640 : index
    %c0_82 = arith.constant 0 : index
    %255 = vector.load %arg2[%c640, %c0_82] : memref<680x32xf32, #tpu.memory_space<vmem>>, vector<32x32xf32>
    %cst_83 = arith.constant dense<0.000000e+00> : vector<2x32xf32>
    %256 = tpu.matmul %254, %255, %cst_83 {dimension_numbers = #tpu.dot_dimension_numbers<[1], [0], [0], [1], [0, 0, 1, 1], [], []>} : vector<2x32xf32>, vector<32x32xf32>, vector<2x32xf32> -> vector<2x32xf32>
    %c672 = arith.constant 672 : index
    %c0_84 = arith.constant 0 : index
    %257 = vector.load %arg2[%c672, %c0_84] : memref<680x32xf32, #tpu.memory_space<vmem>>, vector<1x32xf32>
    %258 = vector.broadcast %257 : vector<1x32xf32> to vector<2x32xf32>
    %259 = arith.addf %256, %258 : vector<2x32xf32>
    %260 = vector.extract_strided_slice %259 {offsets = [0, 0], sizes = [2, 10], strides = [1, 1]} : vector<2x32xf32> to vector<2x10xf32>
    %c0_85 = arith.constant 0 : index
    %c0_86 = arith.constant 0 : index
    %261 = vector.load %arg4[%c0_85, %c0_86] : memref<2x10xf32, #tpu.memory_space<vmem>>, vector<2x10xf32>
    tpu.vector_store %arg4[%c0_85, %c0_86], %260 {strides = array<i32>} : memref<2x10xf32, #tpu.memory_space<vmem>>, vector<2x10xf32>,
    return
  }
  func.func @transform_0(%arg0: i32) -> (i32, i32) {
    %c0_i32 = arith.constant 0 : i32
    %c0_i32_0 = arith.constant 0 : i32
    %c0_i32_1 = arith.constant 0 : i32
    return %c0_i32, %c0_i32_0 : i32, i32
  }
  func.func @transform_1(%arg0: i32) -> (i32, i32) {
    %c0_i32 = arith.constant 0 : i32
    %c0_i32_0 = arith.constant 0 : i32
    %c0_i32_1 = arith.constant 0 : i32
    return %c0_i32, %c0_i32_0 : i32, i32
  }
  func.func @transform_2(%arg0: i32) -> (i32, i32) {
    %c0_i32 = arith.constant 0 : i32
    %c0_i32_0 = arith.constant 0 : i32
    %c0_i32_1 = arith.constant 0 : i32
    return %c0_i32, %c0_i32_0 : i32, i32
  }
  func.func @transform_3(%arg0: i32) -> (i32, i32) {
    %c0_i32 = arith.constant 0 : i32
    %c0_i32_0 = arith.constant 0 : i32
    %c0_i32_1 = arith.constant 0 : i32
    return %c0_i32, %c0_i32_0 : i32, i32
  }
}

</mosaic_0001>

<llo_original>
// kernel: vit_forward.1
$region0: #{vit_forward.1}
  #allocation0 [shape = 'u32[]', space=smem, size = 0x4, offset = 0x4, fixed_abs, tag = 'smem constant byte address 0x4 - core index']
  #allocation1 [shape = 'u32[144,128]{1,0:T(1,128)}', space=vmem, size = 0x12000, scoped, tag = 'internal scratch']
  %s0 = inlined_call_operand.vmem [shape: f32[10,264], index: 0, kind: input, shape index: {}]
  %s1 = inlined_call_operand.vmem [shape: f32[680,32], index: 1, kind: input, shape index: {}]
  %s2 = inlined_call_operand.vmem [shape: f32[160,96], index: 2, kind: input, shape index: {}]
  %s3 = inlined_call_operand.hbm [shape: f32[2,10], index: 3, kind: output, shape index: {}]
  %s4 = sld [smem:[#allocation0]]
  $region22: #{vit_forward.1} parent=0
    _
  %s6 = ssub.s32 1, %s4
  %s7 = scalar_select 0, %s6, %s4
  $region1: #{vit_forward.1} parent=0
    #allocation2 [shape = 'u8[1024]{0}', space=vmem, size = 0x400, scoped, tag = 'output window, operand 0, single buffered']
    #allocation3 [shape = 's32[1]{0}', space=sflag, size = 0x4, scoped, tag = 'scoped memory for vit_forward.1']
    %8 = vsyncpa [#allocation3], 0
    // Predicated region
    $region2: #{vit_forward.1} parent=1 // pred_check
      _
    $region3: #{vit_forward.1} parent=1 // pred_check_branch
      %10 = sbr.rel (0) target = $region5
    $region4: #{vit_forward.1} parent=1 // pred_region
      _
    $region5: #{vit_forward.1} parent=1 // pred_fallthru
      _
    // Predicated region
    $region6: #{vit_forward.1} parent=1 // pred_check
      _
    $region7: #{vit_forward.1} parent=1 // pred_check_branch
      %12 = sbr.rel (0) target = $region9
    $region8: #{vit_forward.1} parent=1 // pred_region
      _
    $region9: #{vit_forward.1} parent=1 // pred_fallthru
      _
    // Predicated region
    $region10: #{vit_forward.1} parent=1 // pred_check
      _
    $region11: #{vit_forward.1} parent=1 // pred_check_branch
      %14 = sbr.rel (0) target = $region13
    $region12: #{vit_forward.1} parent=1 // pred_region
      _
    $region13: #{vit_forward.1} parent=1 // pred_fallthru
      _
    %v15 = vld [vmem:[%s1 + $0x108] sm:$0x1f]
    %v16 = vld [vmem:[%s0] sm:$0xff]
    %v17 = vld [vmem:[%s0 + $0x8] sm:$0xff]
    %v18 = vld [vmem:[%s0 + $0x10] sm:$0xff]
    %v19 = vld [vmem:[%s0 + $0x18] sm:$0x3]
    %v20 = vld [vmem:[%s0 + $0x20] sm:$0x3]
    %v21 = vld [vmem:[%s0 + $0x28] sm:$0x3]
    %v22 = vld [vmem:[%s1] sm:$0xff]
    %v23 = vld [vmem:[%s1 + $0x8] sm:$0xff]
    %v24 = vld [vmem:[%s1 + $0x10] sm:$0xff]
    %v25 = vld [vmem:[%s1 + $0x18] sm:$0xff]
    %v26 = vld [vmem:[%s1 + $0x20] sm:$0xff]
    %v27 = vld [vmem:[%s1 + $0x28] sm:$0xff]
    %v28 = vld [vmem:[%s1 + $0x30] sm:$0xff]
    %v29 = vld [vmem:[%s1 + $0x38] sm:$0xff]
    %v30 = vld [vmem:[%s1 + $0x40] sm:$0xff]
    %v31 = vld [vmem:[%s1 + $0x48] sm:$0xff]
    %v32 = vld [vmem:[%s1 + $0x50] sm:$0xff]
    %v33 = vld [vmem:[%s1 + $0x58] sm:$0xff]
    %v34 = vld [vmem:[%s1 + $0x60] sm:$0xff]
    %v35 = vld [vmem:[%s1 + $0x68] sm:$0xff]
    %v36 = vld [vmem:[%s1 + $0x70] sm:$0xff]
    %v37 = vld [vmem:[%s1 + $0x78] sm:$0xff]
    %v38 = vld [vmem:[%s1 + $0x80] sm:$0xff]
    %v39 = vld [vmem:[%s1 + $0x88] sm:$0xff]
    %v40 = vld [vmem:[%s1 + $0x90] sm:$0xff]
    %v41 = vld [vmem:[%s1 + $0x98] sm:$0xff]
    %v42 = vld [vmem:[%s1 + $0xa0] sm:$0xff]
    %v43 = vld [vmem:[%s1 + $0xa8] sm:$0xff]
    %v44 = vld [vmem:[%s1 + $0xb0] sm:$0xff]
    %v45 = vld [vmem:[%s1 + $0xb8] sm:$0xff]
    %v46 = vld [vmem:[%s1 + $0xc0] sm:$0xff]
    %v47 = vld [vmem:[%s1 + $0xc8] sm:$0xff]
    %v48 = vld [vmem:[%s1 + $0xd0] sm:$0xff]
    %v49 = vld [vmem:[%s1 + $0xd8] sm:$0xff]
    %v50 = vld [vmem:[%s1 + $0xe0] sm:$0xff]
    %v51 = vld [vmem:[%s1 + $0xe8] sm:$0xff]
    %v52 = vld [vmem:[%s1 + $0xf0] sm:$0xff]
    %v53 = vld [vmem:[%s1 + $0xf8] sm:$0xff]
    %v54 = vld [vmem:[%s1 + $0x100] sm:$0xff]
    %v56 = vrot.slane %v15, 3
    %vm58 = vcmask 1044480
    %v59 = vsel %vm58, %v15, %v56
    %vm60 = vcmask 64512
    %v62 = vsel %vm60, %v18, 0
    %v65 = vsel %vm60, %v21, 0
    %67 = vmatprep.subr.mxu0 0.0
    %68 = vmatpush1.msra.mxu0 %v22
    %69 = vmatprep.subr.mxu0 0.0
    %70 = vmatpush1.msra.mxu0 %v23
    %71 = vmatprep.subr.mxu0 0.0
    %72 = vmatpush1.msra.mxu0 %v24
    %73 = vmatprep.subr.mxu0 0.0
    %74 = vmatpush1.msra.mxu0 %v25
    %75 = vmatprep.subr.mxu0 0.0
    %76 = vmatpush1.msra.mxu0 %v26
    %77 = vmatprep.subr.mxu0 0.0
    %78 = vmatpush1.msra.mxu0 %v27
    %79 = vmatprep.subr.mxu0 0.0
    %80 = vmatpush1.msra.mxu0 %v28
    %81 = vmatprep.subr.mxu0 0.0
    %82 = vmatpush1.msra.mxu0 %v29
    %83 = vmatprep.subr.mxu0 0.0
    %84 = vmatpush1.msra.mxu0 %v30
    %85 = vmatprep.subr.mxu0 0.0
    %86 = vmatpush1.msra.mxu0 %v31
    %87 = vmatprep.subr.mxu0 0.0
    %88 = vmatpush1.msra.mxu0 %v32
    %89 = vmatprep.subr.mxu0 0.0
    %90 = vmatpush1.msra.mxu0 %v33
    %91 = vmatprep.subr.mxu0 0.0
    %92 = vmatpush1.msra.mxu0 %v34
    %93 = vmatprep.subr.mxu0 0.0
    %94 = vmatpush1.msra.mxu0 %v35
    %95 = vmatprep.subr.mxu0 0.0
    %96 = vmatpush1.msra.mxu0 %v36
    %97 = vmatprep.subr.mxu0 0.0
    %98 = vmatpush1.msra.mxu0 %v37
    %99 = vmatprep.subr.mxu0 0.0
    %100 = vmatpush1.msra.mxu0 %v38
    %101 = vmatprep.subr.mxu0 0.0
    %102 = vmatpush1.msra.mxu0 %v39
    %103 = vmatprep.subr.mxu0 0.0
    %104 = vmatpush1.msra.mxu0 %v40
    %105 = vmatprep.subr.mxu0 0.0
    %106 = vmatpush1.msra.mxu0 %v41
    %107 = vmatprep.subr.mxu0 0.0
    %108 = vmatpush1.msra.mxu0 %v42
    %109 = vmatprep.subr.mxu0 0.0
    %110 = vmatpush1.msra.mxu0 %v43
    %111 = vmatprep.subr.mxu0 0.0
    %112 = vmatpush1.msra.mxu0 %v44
    %113 = vmatprep.subr.mxu0 0.0
    %114 = vmatpush1.msra.mxu0 %v45
    %115 = vmatprep.subr.mxu0 0.0
    %116 = vmatpush1.msra.mxu0 %v46
    %117 = vmatprep.subr.mxu0 0.0
    %118 = vmatpush1.msra.mxu0 %v47
    %119 = vmatprep.subr.mxu0 0.0
    %120 = vmatpush1.msra.mxu0 %v48
    %121 = vmatprep.subr.mxu0 0.0
    %122 = vmatpush1.msra.mxu0 %v49
    %123 = vmatprep.subr.mxu0 0.0
    %124 = vmatpush1.msra.mxu0 %v50
    %125 = vmatprep.subr.mxu0 0.0
    %126 = vmatpush1.msra.mxu0 %v51
    %127 = vmatprep.subr.mxu0 0.0
    %128 = vmatpush1.msra.mxu0 %v52
    %129 = vmatprep.subr.mxu0 0.0
    %130 = vmatpush1.msra.mxu0 %v53
    %131 = vmatprep.mubr.f32.mxu0 %v17
    %132 = vmatmul.mubr.f32.gmra.mrb[0].mxu0 %v16
    %v133 = vpop.f32.mrb[0].mxu0
    %v134 = vadd.f32 %v59, %v133
    %v135 = vpop.f32.mrb[0].mxu0
    %136 = vmatprep.mubr.f32.mxu0 %v20
    %137 = vmatmul.mubr.f32.gmra.mrb[0].mxu0 %v19
    %v138 = vpop.f32.mrb[0].mxu0
    %v139 = vadd.f32 %v56, %v138
    %v140 = vpop.f32.mrb[0].mxu0
    %141 = vdwg.mxu0
    %142 = vmatprep.subr.mxu0 0.0
    %143 = vmatpush1.msra.mxu0 %v54
    %144 = vmatprep.subr.mxu0 0.0
    %145 = vmatpush1.msra.mxu0 0.0
    %146 = vmatprep.subr.mxu0 0.0
    %147 = vmatpush1.msra.mxu0 0.0
    %148 = vmatprep.subr.mxu0 0.0
    %149 = vmatpush1.msra.mxu0 0.0
    %150 = vmatprep.subr.mxu0 0.0
    %151 = vmatpush1.msra.mxu0 0.0
    %152 = vmatprep.subr.mxu0 0.0
    %153 = vmatpush1.msra.mxu0 0.0
    %154 = vmatprep.subr.mxu0 0.0
    %155 = vmatpush1.msra.mxu0 0.0
    %156 = vmatprep.subr.mxu0 0.0
    %157 = vmatpush1.msra.mxu0 0.0
    %158 = vmatprep.subr.mxu0 0.0
    %159 = vmatpush1.msra.mxu0 0.0
    %160 = vmatprep.subr.mxu0 0.0
    %161 = vmatpush1.msra.mxu0 0.0
    %162 = vmatprep.subr.mxu0 0.0
    %163 = vmatpush1.msra.mxu0 0.0
    %164 = vmatprep.subr.mxu0 0.0
    %165 = vmatpush1.msra.mxu0 0.0
    %166 = vmatprep.subr.mxu0 0.0
    %167 = vmatpush1.msra.mxu0 0.0
    %168 = vmatprep.subr.mxu0 0.0
    %169 = vmatpush1.msra.mxu0 0.0
    %170 = vmatprep.subr.mxu0 0.0
    %171 = vmatpush1.msra.mxu0 0.0
    %172 = vmatprep.subr.mxu0 0.0
    %173 = vmatpush1.msra.mxu0 0.0
    %174 = vmatprep.subr.mxu0 0.0
    %175 = vmatpush1.msra.mxu0 0.0
    %176 = vmatprep.subr.mxu0 0.0
    %177 = vmatpush1.msra.mxu0 0.0
    %178 = vmatprep.subr.mxu0 0.0
    %179 = vmatpush1.msra.mxu0 0.0
    %180 = vmatprep.subr.mxu0 0.0
    %181 = vmatpush1.msra.mxu0 0.0
    %182 = vmatprep.subr.mxu0 0.0
    %183 = vmatpush1.msra.mxu0 0.0
    %184 = vmatprep.subr.mxu0 0.0
    %185 = vmatpush1.msra.mxu0 0.0
    %186 = vmatprep.subr.mxu0 0.0
    %187 = vmatpush1.msra.mxu0 0.0
    %188 = vmatprep.subr.mxu0 0.0
    %189 = vmatpush1.msra.mxu0 0.0
    %190 = vmatprep.subr.mxu0 0.0
    %191 = vmatpush1.msra.mxu0 0.0
    %192 = vmatprep.subr.mxu0 0.0
    %193 = vmatpush1.msra.mxu0 0.0
    %194 = vmatprep.subr.mxu0 0.0
    %195 = vmatpush1.msra.mxu0 0.0
    %196 = vmatprep.subr.mxu0 0.0
    %197 = vmatpush1.msra.mxu0 0.0
    %198 = vmatprep.subr.mxu0 0.0
    %199 = vmatpush1.msra.mxu0 0.0
    %200 = vmatprep.subr.mxu0 0.0
    %201 = vmatpush1.msra.mxu0 0.0
    %202 = vmatprep.subr.mxu0 0.0
    %203 = vmatpush1.msra.mxu0 0.0
    %204 = vmatprep.subr.mxu0 0.0
    %205 = vmatpush1.msra.mxu0 0.0
    %206 = vmatprep.mubr.f32.mxu0 0.0
    %207 = vmatmul.mubr.f32.gmra.mrb[0].mxu0 %v62
    %v208 = vpop.f32.mrb[0].mxu0
    %v209 = vadd.f32 %v134, %v208
    %v210 = vpop.f32.mrb[0].mxu0
    %211 = vmatprep.mubr.f32.mxu0 0.0
    %212 = vmatmul.mubr.f32.gmra.mrb[0].mxu0 %v65
    %v213 = vpop.f32.mrb[0].mxu0
    %v214 = vadd.f32 %v139, %v213
    %v215 = vpop.f32.mrb[0].mxu0
    %216 = vdwg.mxu0
    %v217 = vlaneseq
    %v218 = vshrl.u32 %v217, 7
    %v219 = vadd.s32 %v218, 8
    %v220 = vadd.s32 %v218, 16
    %v221 = vadd.s32 %v218, 24
    %v222 = vadd.s32 %v218, 32
    %v223 = vlaneseq
    %v224 = vand.u32 %v223, 127
    %v225 = vcvt.s32.f32 %v218
    %v226 = vcvt.s32.f32 %v219
    %v227 = vcvt.s32.f32 %v220
    %v228 = vcvt.s32.f32 %v221
    %v229 = vcvt.s32.f32 %v222
    %v230 = vmul.f32 %v225, 0.2
    %v231 = vmul.f32 %v226, 0.2
    %v232 = vmul.f32 %v227, 0.2
    %v233 = vmul.f32 %v228, 0.2
    %v234 = vmul.f32 %v229, 0.2
    %v235 = vcvt.f32.s32.to.zero.pseudo %v230
    %v236 = vcvt.f32.s32.to.zero.pseudo %v231
    %v237 = vcvt.f32.s32.to.zero.pseudo %v232
    %v238 = vcvt.f32.s32.to.zero.pseudo %v233
    %v239 = vcvt.f32.s32.to.zero.pseudo %v234
    %v240 = vcvt.s32.f32 %v224
    %v241 = vmul.f32 %v240, 0.2
    %v242 = vcvt.f32.s32.to.zero.pseudo %v241
    %vm243 = vcmp.eq.s32.totalorder %v235, %v242
    %vm244 = vcmp.eq.s32.totalorder %v236, %v242
    %vm245 = vcmp.eq.s32.totalorder %v237, %v242
    %vm246 = vcmp.eq.s32.totalorder %v238, %v242
    %vm247 = vcmp.eq.s32.totalorder %v239, %v242
    %v248 = vsel %vm243, 0.0, -1e+30
    %v249 = vsel %vm244, 0.0, -1e+30
    %v250 = vsel %vm245, 0.0, -1e+30
    %v251 = vsel %vm246, 0.0, -1e+30
    %v252 = vsel %vm247, 0.0, -1e+30
    %v253 = vld [vmem:[%s1 + $0x110] sm:$0x1]
    %v254 = vld [vmem:[%s1 + $0x118] sm:$0x1]
    %vm255 = vcmask 261120
    %v256 = vsel %vm255, %v209, 0.0
    %257 = vadd.xlane.f32.xlu0 %v256
    %v258 = vpop.xlane.xlu0 %257
    %vm259 = vcmask 254976
    %v260 = vsel %vm259, %v214, 0.0
    %261 = vadd.xlane.f32.xlu0 %v260
    %v262 = vpop.xlane.xlu0 %261
    %v263 = vrcp.pop 32.0
    %v264 = vmul.f32 %v258, %v263
    %v265 = vmul.f32 %v262, %v263
    %v266 = vsub.f32 %v209, %v264
    %v267 = vsub.f32 %v214, %v265
    %v268 = vmul.f32 %v266, %v266
    %v269 = vmul.f32 %v267, %v267
    %v270 = vsel %vm255, %v268, 0.0
    %271 = vadd.xlane.f32.xlu0 %v270
    %v272 = vpop.xlane.xlu0 %271
    %v273 = vsel %vm259, %v269, 0.0
    %274 = vadd.xlane.f32.xlu0 %v273
    %v275 = vpop.xlane.xlu0 %274
    %v276 = vmul.f32 %v272, %v263
    %v277 = vmul.f32 %v275, %v263
    %v278 = vadd.f32 %v276, 1e-06
    %v279 = vadd.f32 %v277, 1e-06
    %v280 = vrsqrt.pop %v278
    %v281 = vrsqrt.pop %v279
    %v282 = vmul.f32 %v266, %v280
    %v283 = vmul.f32 %v267, %v281
    %v284 = vlaneseq
    %v285 = vshrl.u32 %v284, 7
    %v286 = vsub.s32 0, %v285
    %v287 = vrot.slane %v253, %v286
    %v288 = vmul.f32 %v282, %v287
    %v289 = vmul.f32 %v283, %v287
    %v290 = vlaneseq
    %v291 = vshrl.u32 %v290, 7
    %v292 = vsub.s32 0, %v291
    %v293 = vrot.slane %v254, %v292
    %v294 = vadd.f32 %v288, %v293
    %v295 = vadd.f32 %v289, %v293
    %v296 = vld [vmem:[%s2] sm:$0xff]
    %v297 = vld [vmem:[%s2 + $0x8] sm:$0xff]
    %v298 = vld [vmem:[%s2 + $0x10] sm:$0xff]
    %v299 = vld [vmem:[%s2 + $0x18] sm:$0xff]
    %v300 = vld [vmem:[%s2 + $0x20] sm:$0x1]
    %v301 = vlaneseq
    %v302 = vshrl.u32 %v301, 7
    %v303 = vsub.s32 0, %v302
    %v304 = vrot.slane %v300, %v303
    %v306 = vsel %vm255, %v294, 0
    %v309 = vsel %vm255, %v295, 0
    %311 = vmatprep.subr.mxu0 0.0
    %312 = vmatpush1.msra.mxu0 %v296
    %313 = vmatprep.subr.mxu0 0.0
    %314 = vmatpush1.msra.mxu0 %v297
    %315 = vmatprep.subr.mxu0 0.0
    %316 = vmatpush1.msra.mxu0 %v298
    %317 = vmatprep.subr.mxu0 0.0
    %318 = vmatpush1.msra.mxu0 %v299
    %319 = vmatprep.subr.mxu0 0.0
    %320 = vmatpush1.msra.mxu0 0.0
    %321 = vmatprep.subr.mxu0 0.0
    %322 = vmatpush1.msra.mxu0 0.0
    %323 = vmatprep.subr.mxu0 0.0
    %324 = vmatpush1.msra.mxu0 0.0
    %325 = vmatprep.subr.mxu0 0.0
    %326 = vmatpush1.msra.mxu0 0.0
    %327 = vmatprep.subr.mxu0 0.0
    %328 = vmatpush1.msra.mxu0 0.0
    %329 = vmatprep.subr.mxu0 0.0
    %330 = vmatpush1.msra.mxu0 0.0
    %331 = vmatprep.subr.mxu0 0.0
    %332 = vmatpush1.msra.mxu0 0.0
    %333 = vmatprep.subr.mxu0 0.0
    %334 = vmatpush1.msra.mxu0 0.0
    %335 = vmatprep.subr.mxu0 0.0
    %336 = vmatpush1.msra.mxu0 0.0
    %337 = vmatprep.subr.mxu0 0.0
    %338 = vmatpush1.msra.mxu0 0.0
    %339 = vmatprep.subr.mxu0 0.0
    %340 = vmatpush1.msra.mxu0 0.0
    %341 = vmatprep.subr.mxu0 0.0
    %342 = vmatpush1.msra.mxu0 0.0
    %343 = vmatprep.subr.mxu0 0.0
    %344 = vmatpush1.msra.mxu0 0.0
    %345 = vmatprep.subr.mxu0 0.0
    %346 = vmatpush1.msra.mxu0 0.0
    %347 = vmatprep.subr.mxu0 0.0
    %348 = vmatpush1.msra.mxu0 0.0
    %349 = vmatprep.subr.mxu0 0.0
    %350 = vmatpush1.msra.mxu0 0.0
    %351 = vmatprep.subr.mxu0 0.0
    %352 = vmatpush1.msra.mxu0 0.0
    %353 = vmatprep.subr.mxu0 0.0
    %354 = vmatpush1.msra.mxu0 0.0
    %355 = vmatprep.subr.mxu0 0.0
    %356 = vmatpush1.msra.mxu0 0.0
    %357 = vmatprep.subr.mxu0 0.0
    %358 = vmatpush1.msra.mxu0 0.0
    %359 = vmatprep.subr.mxu0 0.0
    %360 = vmatpush1.msra.mxu0 0.0
    %361 = vmatprep.subr.mxu0 0.0
    %362 = vmatpush1.msra.mxu0 0.0
    %363 = vmatprep.subr.mxu0 0.0
    %364 = vmatpush1.msra.mxu0 0.0
    %365 = vmatprep.subr.mxu0 0.0
    %366 = vmatpush1.msra.mxu0 0.0
    %367 = vmatprep.subr.mxu0 0.0
    %368 = vmatpush1.msra.mxu0 0.0
    %369 = vmatprep.subr.mxu0 0.0
    %370 = vmatpush1.msra.mxu0 0.0
    %371 = vmatprep.subr.mxu0 0.0
    %372 = vmatpush1.msra.mxu0 0.0
    %373 = vmatprep.subr.mxu0 0.0
    %374 = vmatpush1.msra.mxu0 0.0
    %375 = vmatprep.mubr.f32.mxu0 0.0
    %376 = vmatmul.mubr.f32.gmra.mrb[0].mxu0 %v306
    %v377 = vpop.f32.mrb[0].mxu0
    %v378 = vadd.f32 %v304, %v377
    %v379 = vpop.f32.mrb[0].mxu0
    %380 = vmatprep.mubr.f32.mxu0 0.0
    %381 = vmatmul.mubr.f32.gmra.mrb[0].mxu0 %v309
    %v382 = vpop.f32.mrb[0].mxu0
    %v383 = vadd.f32 %v304, %v382
    %v384 = vpop.f32.mrb[0].mxu0
    %385 = vdwg.mxu0
    %vm388 = vcmask 1041408
    %v389 = vrot.slane %v378, 6
    %v390 = vrot.slane %v383, 6
    %v391 = vsel %vm388, %v389, %v390
    %392 = vrot.lane.b32.xlu0 %v389, 104
    %v393 = vpop.permute.xlu0 %392
    %394 = vrot.lane.b32.xlu0 %v391, 104
    %v395 = vpop.permute.xlu0 %394
    %vm398 = vcmask 1043456
    %v399 = vrot.slane %v378, 4
    %v400 = vrot.slane %v383, 4
    %v401 = vsel %vm398, %v399, %v400
    %402 = vrot.lane.b32.xlu0 %v399, 80
    %v403 = vpop.permute.xlu0 %402
    %404 = vrot.lane.b32.xlu0 %v401, 80
    %v405 = vpop.permute.xlu0 %404
    %vm408 = vcmask 1045504
    %v409 = vrot.slane %v378, 2
    %v410 = vrot.slane %v383, 2
    %v411 = vsel %vm408, %v409, %v410
    %412 = vrot.lane.b32.xlu0 %v409, 56
    %v413 = vpop.permute.xlu0 %412
    %414 = vrot.lane.b32.xlu0 %v411, 56
    %v415 = vpop.permute.xlu0 %414
    %v417 = vsel %vm388, %v383, %v393
    %v418 = vsel %vm398, %v395, %v403
    %v419 = vsel %vm408, %v405, %v413
    %423 = vrot.lane.b32.xlu0 %v378, 120
    %v424 = vpop.permute.xlu0 %423
    %425 = vrot.lane.b32.xlu0 %v417, 120
    %v426 = vpop.permute.xlu0 %425
    %427 = vrot.lane.b32.xlu0 %v418, 120
    %v428 = vpop.permute.xlu0 %427
    %429 = vrot.lane.b32.xlu0 %v419, 120
    %v430 = vpop.permute.xlu0 %429
    %431 = vrot.lane.b32.xlu0 %v415, 120
    %v432 = vpop.permute.xlu0 %431
    %v433 = vsel %vm60, %v378, 0
    %v435 = vsel %vm60, %v417, 0
    %v437 = vsel %vm60, %v418, 0
    %v439 = vsel %vm60, %v419, 0
    %v441 = vsel %vm60, %v415, 0
    %v443 = vsel %vm60, %v424, 0
    %v445 = vsel %vm60, %v426, 0
    %v447 = vsel %vm60, %v428, 0
    %v449 = vsel %vm60, %v430, 0
    %v451 = vsel %vm60, %v432, 0
    %453 = vmatprep.subr.mxu0 0.0
    %454 = vmatpush1.xpose.msra.mxu0 %v443
    %455 = vmatprep.subr.mxu0 0.0
    %456 = vmatpush1.xpose.msra.mxu0 %v445
    %457 = vmatprep.subr.mxu0 0.0
    %458 = vmatpush1.xpose.msra.mxu0 %v447
    %459 = vmatprep.subr.mxu0 0.0
    %460 = vmatpush1.xpose.msra.mxu0 %v449
    %461 = vmatprep.subr.mxu0 0.0
    %462 = vmatpush1.xpose.msra.mxu0 %v451
    %463 = vmatprep.subr.mxu0 0.0
    %464 = vmatpush1.xpose.msra.mxu0 0.0
    %465 = vmatprep.subr.mxu0 0.0
    %466 = vmatpush1.xpose.msra.mxu0 0.0
    %467 = vmatprep.subr.mxu0 0.0
    %468 = vmatpush1.xpose.msra.mxu0 0.0
    %469 = vmatprep.subr.mxu0 0.0
    %470 = vmatpush1.xpose.msra.mxu0 0.0
    %471 = vmatprep.subr.mxu0 0.0
    %472 = vmatpush1.xpose.msra.mxu0 0.0
    %473 = vmatprep.subr.mxu0 0.0
    %474 = vmatpush1.xpose.msra.mxu0 0.0
    %475 = vmatprep.subr.mxu0 0.0
    %476 = vmatpush1.xpose.msra.mxu0 0.0
    %477 = vmatprep.subr.mxu0 0.0
    %478 = vmatpush1.xpose.msra.mxu0 0.0
    %479 = vmatprep.subr.mxu0 0.0
    %480 = vmatpush1.xpose.msra.mxu0 0.0
    %481 = vmatprep.subr.mxu0 0.0
    %482 = vmatpush1.xpose.msra.mxu0 0.0
    %483 = vmatprep.subr.mxu0 0.0
    %484 = vmatpush1.xpose.msra.mxu0 0.0
    %485 = vmatprep.subr.mxu0 0.0
    %486 = vmatpush1.xpose.msra.mxu0 0.0
    %487 = vmatprep.subr.mxu0 0.0
    %488 = vmatpush1.xpose.msra.mxu0 0.0
    %489 = vmatprep.subr.mxu0 0.0
    %490 = vmatpush1.xpose.msra.mxu0 0.0
    %491 = vmatprep.subr.mxu0 0.0
    %492 = vmatpush1.xpose.msra.mxu0 0.0
    %493 = vmatprep.subr.mxu0 0.0
    %494 = vmatpush1.xpose.msra.mxu0 0.0
    %495 = vmatprep.subr.mxu0 0.0
    %496 = vmatpush1.xpose.msra.mxu0 0.0
    %497 = vmatprep.subr.mxu0 0.0
    %498 = vmatpush1.xpose.msra.mxu0 0.0
    %499 = vmatprep.subr.mxu0 0.0
    %500 = vmatpush1.xpose.msra.mxu0 0.0
    %501 = vmatprep.subr.mxu0 0.0
    %502 = vmatpush1.xpose.msra.mxu0 0.0
    %503 = vmatprep.subr.mxu0 0.0
    %504 = vmatpush1.xpose.msra.mxu0 0.0
    %505 = vmatprep.subr.mxu0 0.0
    %506 = vmatpush1.xpose.msra.mxu0 0.0
    %507 = vmatprep.subr.mxu0 0.0
    %508 = vmatpush1.xpose.msra.mxu0 0.0
    %509 = vmatprep.subr.mxu0 0.0
    %510 = vmatpush1.xpose.msra.mxu0 0.0
    %511 = vmatprep.subr.mxu0 0.0
    %512 = vmatpush1.xpose.msra.mxu0 0.0
    %513 = vmatprep.subr.mxu0 0.0
    %514 = vmatpush1.xpose.msra.mxu0 0.0
    %515 = vmatprep.subr.mxu0 0.0
    %516 = vmatpush1.xpose.msra.mxu0 0.0
    %517 = vmatprep.mubr.f32.mxu0 0.0
    %518 = vmatmul.mubr.f32.gmra.mrb[0].mxu0 %v433
    %v519 = vpop.f32.mrb[0].mxu0
    %v520 = vadd.f32 %v248, %v519
    %v521 = vpop.f32.mrb[0].mxu0
    %522 = vmatprep.mubr.f32.mxu0 0.0
    %523 = vmatmul.mubr.f32.gmra.mrb[0].mxu0 %v435
    %v524 = vpop.f32.mrb[0].mxu0
    %v525 = vadd.f32 %v249, %v524
    %v526 = vpop.f32.mrb[0].mxu0
    %527 = vmatprep.mubr.f32.mxu0 0.0
    %528 = vmatmul.mubr.f32.gmra.mrb[0].mxu0 %v437
    %v529 = vpop.f32.mrb[0].mxu0
    %v530 = vadd.f32 %v250, %v529
    %v531 = vpop.f32.mrb[0].mxu0
    %532 = vmatprep.mubr.f32.mxu0 0.0
    %533 = vmatmul.mubr.f32.gmra.mrb[0].mxu0 %v439
    %v534 = vpop.f32.mrb[0].mxu0
    %v535 = vadd.f32 %v251, %v534
    %v536 = vpop.f32.mrb[0].mxu0
    %537 = vmatprep.mubr.f32.mxu0 0.0
    %538 = vmatmul.mubr.f32.gmra.mrb[0].mxu0 %v441
    %v539 = vpop.f32.mrb[0].mxu0
    %v540 = vadd.f32 %v252, %v539
    %v541 = vpop.f32.mrb[0].mxu0
    %542 = vdwg.mxu0
    %vm543 = vcmask 326656
    %v544 = vsel %vm543, %v520, -inf
    %545 = vmax.xlane.f32.xlu0 %v544
    %v546 = vpop.xlane.xlu0 %545
    %v547 = vsel %vm543, %v525, -inf
    %548 = vmax.xlane.f32.xlu0 %v547
    %v549 = vpop.xlane.xlu0 %548
    %v550 = vsel %vm543, %v530, -inf
    %551 = vmax.xlane.f32.xlu0 %v550
    %v552 = vpop.xlane.xlu0 %551
    %v553 = vsel %vm543, %v535, -inf
    %554 = vmax.xlane.f32.xlu0 %v553
    %v555 = vpop.xlane.xlu0 %554
    %v556 = vsel %vm543, %v540, -inf
    %557 = vmax.xlane.f32.xlu0 %v556
    %v558 = vpop.xlane.xlu0 %557
    %v559 = vsub.f32 %v520, %v546
    %v560 = vsub.f32 %v525, %v549
    %v561 = vsub.f32 %v530, %v552
    %v562 = vsub.f32 %v535, %v555
    %v563 = vsub.f32 %v540, %v558
    %v564 = vmul.f32 %v559, 1.442695
    %v565 = vpow.pop %v564
    %v566 = vmul.f32 %v560, 1.442695
    %v567 = vpow.pop %v566
    %v568 = vmul.f32 %v561, 1.442695
    %v569 = vpow.pop %v568
    %v570 = vmul.f32 %v562, 1.442695
    %v571 = vpow.pop %v570
    %v572 = vmul.f32 %v563, 1.442695
    %v573 = vpow.pop %v572
    %v574 = vsel %vm543, %v565, 0.0
    %575 = vadd.xlane.f32.xlu0 %v574
    %v576 = vpop.xlane.xlu0 %575
    %v577 = vsel %vm543, %v567, 0.0
    %578 = vadd.xlane.f32.xlu0 %v577
    %v579 = vpop.xlane.xlu0 %578
    %v580 = vsel %vm543, %v569, 0.0
    %581 = vadd.xlane.f32.xlu0 %v580
    %v582 = vpop.xlane.xlu0 %581
    %v583 = vsel %vm543, %v571, 0.0
    %584 = vadd.xlane.f32.xlu0 %v583
    %v585 = vpop.xlane.xlu0 %584
    %v586 = vsel %vm543, %v573, 0.0
    %587 = vadd.xlane.f32.xlu0 %v586
    %v588 = vpop.xlane.xlu0 %587
    %v589 = vrcp.pop %v576
    %v590 = vrcp.pop %v579
    %v591 = vrcp.pop %v582
    %v592 = vrcp.pop %v585
    %v593 = vrcp.pop %v588
    %v594 = vmul.f32 %v565, %v589
    %v595 = vmul.f32 %v567, %v590
    %v596 = vmul.f32 %v569, %v591
    %v597 = vmul.f32 %v571, %v592
    %v598 = vmul.f32 %v573, %v593
    %599 = vrot.lane.b32.xlu0 %v378, 112
    %v600 = vpop.permute.xlu0 %599
    %601 = vrot.lane.b32.xlu0 %v417, 112
    %v602 = vpop.permute.xlu0 %601
    %603 = vrot.lane.b32.xlu0 %v418, 112
    %v604 = vpop.permute.xlu0 %603
    %605 = vrot.lane.b32.xlu0 %v419, 112
    %v606 = vpop.permute.xlu0 %605
    %607 = vrot.lane.b32.xlu0 %v415, 112
    %v608 = vpop.permute.xlu0 %607
    %v615 = vsel %vm543, %v594, 0
    %v618 = vsel %vm543, %v595, 0
    %v621 = vsel %vm543, %v596, 0
    %v624 = vsel %vm543, %v597, 0
    %v627 = vsel %vm543, %v598, 0
    %629 = vmatprep.subr.mxu0 0.0
    %630 = vmatpush1.msra.mxu0 %v600
    %631 = vmatprep.subr.mxu0 0.0
    %632 = vmatpush1.msra.mxu0 %v602
    %633 = vmatprep.subr.mxu0 0.0
    %634 = vmatpush1.msra.mxu0 %v604
    %635 = vmatprep.subr.mxu0 0.0
    %636 = vmatpush1.msra.mxu0 %v606
    %637 = vmatprep.subr.mxu0 0.0
    %638 = vmatpush1.msra.mxu0 %v608
    %639 = vmatprep.subr.mxu0 0.0
    %640 = vmatpush1.msra.mxu0 0.0
    %641 = vmatprep.subr.mxu0 0.0
    %642 = vmatpush1.msra.mxu0 0.0
    %643 = vmatprep.subr.mxu0 0.0
    %644 = vmatpush1.msra.mxu0 0.0
    %645 = vmatprep.subr.mxu0 0.0
    %646 = vmatpush1.msra.mxu0 0.0
    %647 = vmatprep.subr.mxu0 0.0
    %648 = vmatpush1.msra.mxu0 0.0
    %649 = vmatprep.subr.mxu0 0.0
    %650 = vmatpush1.msra.mxu0 0.0
    %651 = vmatprep.subr.mxu0 0.0
    %652 = vmatpush1.msra.mxu0 0.0
    %653 = vmatprep.subr.mxu0 0.0
    %654 = vmatpush1.msra.mxu0 0.0
    %655 = vmatprep.subr.mxu0 0.0
    %656 = vmatpush1.msra.mxu0 0.0
    %657 = vmatprep.subr.mxu0 0.0
    %658 = vmatpush1.msra.mxu0 0.0
    %659 = vmatprep.subr.mxu0 0.0
    %660 = vmatpush1.msra.mxu0 0.0
    %661 = vmatprep.subr.mxu0 0.0
    %662 = vmatpush1.msra.mxu0 0.0
    %663 = vmatprep.subr.mxu0 0.0
    %664 = vmatpush1.msra.mxu0 0.0
    %665 = vmatprep.subr.mxu0 0.0
    %666 = vmatpush1.msra.mxu0 0.0
    %667 = vmatprep.subr.mxu0 0.0
    %668 = vmatpush1.msra.mxu0 0.0
    %669 = vmatprep.subr.mxu0 0.0
    %670 = vmatpush1.msra.mxu0 0.0
    %671 = vmatprep.subr.mxu0 0.0
    %672 = vmatpush1.msra.mxu0 0.0
    %673 = vmatprep.subr.mxu0 0.0
    %674 = vmatpush1.msra.mxu0 0.0
    %675 = vmatprep.subr.mxu0 0.0
    %676 = vmatpush1.msra.mxu0 0.0
    %677 = vmatprep.subr.mxu0 0.0
    %678 = vmatpush1.msra.mxu0 0.0
    %679 = vmatprep.subr.mxu0 0.0
    %680 = vmatpush1.msra.mxu0 0.0
    %681 = vmatprep.subr.mxu0 0.0
    %682 = vmatpush1.msra.mxu0 0.0
    %683 = vmatprep.subr.mxu0 0.0
    %684 = vmatpush1.msra.mxu0 0.0
    %685 = vmatprep.subr.mxu0 0.0
    %686 = vmatpush1.msra.mxu0 0.0
    %687 = vmatprep.subr.mxu0 0.0
    %688 = vmatpush1.msra.mxu0 0.0
    %689 = vmatprep.subr.mxu0 0.0
    %690 = vmatpush1.msra.mxu0 0.0
    %691 = vmatprep.subr.mxu0 0.0
    %692 = vmatpush1.msra.mxu0 0.0
    %693 = vmatprep.mubr.f32.mxu0 0.0
    %694 = vmatmul.mubr.f32.gmra.mrb[0].mxu0 %v615
    %v695 = vpop.f32.mrb[0].mxu0
    %v696 = vadd.f32 0.0, %v695
    %v697 = vpop.f32.mrb[0].mxu0
    %698 = vmatprep.mubr.f32.mxu0 0.0
    %699 = vmatmul.mubr.f32.gmra.mrb[0].mxu0 %v618
    %v700 = vpop.f32.mrb[0].mxu0
    %v701 = vadd.f32 0.0, %v700
    %v702 = vpop.f32.mrb[0].mxu0
    %703 = vmatprep.mubr.f32.mxu0 0.0
    %704 = vmatmul.mubr.f32.gmra.mrb[0].mxu0 %v621
    %v705 = vpop.f32.mrb[0].mxu0
    %v706 = vadd.f32 0.0, %v705
    %v707 = vpop.f32.mrb[0].mxu0
    %708 = vmatprep.mubr.f32.mxu0 0.0
    %709 = vmatmul.mubr.f32.gmra.mrb[0].mxu0 %v624
    %v710 = vpop.f32.mrb[0].mxu0
    %v711 = vadd.f32 0.0, %v710
    %v712 = vpop.f32.mrb[0].mxu0
    %713 = vmatprep.mubr.f32.mxu0 0.0
    %714 = vmatmul.mubr.f32.gmra.mrb[0].mxu0 %v627
    %v715 = vpop.f32.mrb[0].mxu0
    %v716 = vadd.f32 0.0, %v715
    %v717 = vpop.f32.mrb[0].mxu0
    %718 = vdwg.mxu0
    %v721 = vrot.slane %v701, 2
    %v722 = vrot.slane %v706, 2
    %v723 = vsel %vm408, %v721, %v722
    %724 = vrot.lane.b32.xlu0 %v723, 8
    %v725 = vpop.permute.xlu0 %724
    %726 = vrot.lane.b32.xlu0 %v722, 8
    %v727 = vpop.permute.xlu0 %726
    %v731 = vrot.slane %v706, 4
    %v732 = vrot.slane %v711, 4
    %v733 = vsel %vm398, %v731, %v732
    %734 = vrot.lane.b32.xlu0 %v733, 16
    %v735 = vpop.permute.xlu0 %734
    %736 = vrot.lane.b32.xlu0 %v732, 16
    %v737 = vpop.permute.xlu0 %736
    %v741 = vrot.slane %v711, 6
    %v742 = vrot.slane %v716, 6
    %v743 = vsel %vm388, %v741, %v742
    %744 = vrot.lane.b32.xlu0 %v743, 24
    %v745 = vpop.permute.xlu0 %744
    %746 = vrot.lane.b32.xlu0 %v742, 24
    %v747 = vpop.permute.xlu0 %746
    %v750 = vsel %vm60, %v696, %v725
    %v751 = vsel %vm60, %v701, %v727
    %vm752 = vcmask 130048
    %v753 = vsel %vm752, %v750, %v735
    %v754 = vsel %vm752, %v751, %v737
    %vm755 = vcmask 195584
    %v756 = vsel %vm755, %v753, %v745
    %v757 = vsel %vm755, %v754, %v747
    %v758 = vld [vmem:[%s1 + $0x120] sm:$0xff]
    %v759 = vld [vmem:[%s1 + $0x128] sm:$0xff]
    %v760 = vld [vmem:[%s1 + $0x130] sm:$0xff]
    %v761 = vld [vmem:[%s1 + $0x138] sm:$0xff]
    %v763 = vsel %vm255, %v756, 0
    %v766 = vsel %vm255, %v757, 0
    %768 = vmatprep.subr.mxu0 0.0
    %769 = vmatpush1.msra.mxu0 %v758
    %770 = vmatprep.subr.mxu0 0.0
    %771 = vmatpush1.msra.mxu0 %v759
    %772 = vmatprep.subr.mxu0 0.0
    %773 = vmatpush1.msra.mxu0 %v760
    %774 = vmatprep.subr.mxu0 0.0
    %775 = vmatpush1.msra.mxu0 %v761
    %776 = vmatprep.subr.mxu0 0.0
    %777 = vmatpush1.msra.mxu0 0.0
    %778 = vmatprep.subr.mxu0 0.0
    %779 = vmatpush1.msra.mxu0 0.0
    %780 = vmatprep.subr.mxu0 0.0
    %781 = vmatpush1.msra.mxu0 0.0
    %782 = vmatprep.subr.mxu0 0.0
    %783 = vmatpush1.msra.mxu0 0.0
    %784 = vmatprep.subr.mxu0 0.0
    %785 = vmatpush1.msra.mxu0 0.0
    %786 = vmatprep.subr.mxu0 0.0
    %787 = vmatpush1.msra.mxu0 0.0
    %788 = vmatprep.subr.mxu0 0.0
    %789 = vmatpush1.msra.mxu0 0.0
    %790 = vmatprep.subr.mxu0 0.0
    %791 = vmatpush1.msra.mxu0 0.0
    %792 = vmatprep.subr.mxu0 0.0
    %793 = vmatpush1.msra.mxu0 0.0
    %794 = vmatprep.subr.mxu0 0.0
    %795 = vmatpush1.msra.mxu0 0.0
    %796 = vmatprep.subr.mxu0 0.0
    %797 = vmatpush1.msra.mxu0 0.0
    %798 = vmatprep.subr.mxu0 0.0
    %799 = vmatpush1.msra.mxu0 0.0
    %800 = vmatprep.subr.mxu0 0.0
    %801 = vmatpush1.msra.mxu0 0.0
    %802 = vmatprep.subr.mxu0 0.0
    %803 = vmatpush1.msra.mxu0 0.0
    %804 = vmatprep.subr.mxu0 0.0
    %805 = vmatpush1.msra.mxu0 0.0
    %806 = vmatprep.subr.mxu0 0.0
    %807 = vmatpush1.msra.mxu0 0.0
    %808 = vmatprep.subr.mxu0 0.0
    %809 = vmatpush1.msra.mxu0 0.0
    %810 = vmatprep.subr.mxu0 0.0
    %811 = vmatpush1.msra.mxu0 0.0
    %812 = vmatprep.subr.mxu0 0.0
    %813 = vmatpush1.msra.mxu0 0.0
    %814 = vmatprep.subr.mxu0 0.0
    %815 = vmatpush1.msra.mxu0 0.0
    %816 = vmatprep.subr.mxu0 0.0
    %817 = vmatpush1.msra.mxu0 0.0
    %818 = vmatprep.subr.mxu0 0.0
    %819 = vmatpush1.msra.mxu0 0.0
    %820 = vmatprep.subr.mxu0 0.0
    %821 = vmatpush1.msra.mxu0 0.0
    %822 = vmatprep.subr.mxu0 0.0
    %823 = vmatpush1.msra.mxu0 0.0
    %824 = vmatprep.subr.mxu0 0.0
    %825 = vmatpush1.msra.mxu0 0.0
    %826 = vmatprep.subr.mxu0 0.0
    %827 = vmatpush1.msra.mxu0 0.0
    %828 = vmatprep.subr.mxu0 0.0
    %829 = vmatpush1.msra.mxu0 0.0
    %830 = vmatprep.subr.mxu0 0.0
    %831 = vmatpush1.msra.mxu0 0.0
    %832 = vmatprep.mubr.f32.mxu0 0.0
    %833 = vmatmul.mubr.f32.gmra.mrb[0].mxu0 %v763
    %v834 = vpop.f32.mrb[0].mxu0
    %v835 = vadd.f32 0.0, %v834
    %v836 = vpop.f32.mrb[0].mxu0
    %837 = vmatprep.mubr.f32.mxu0 0.0
    %838 = vmatmul.mubr.f32.gmra.mrb[0].mxu0 %v766
    %v839 = vpop.f32.mrb[0].mxu0
    %v840 = vadd.f32 0.0, %v839
    %v841 = vpop.f32.mrb[0].mxu0
    %842 = vdwg.mxu0
    %v843 = vadd.f32 %v209, %v835
    %v844 = vadd.f32 %v214, %v840
    %v845 = vld [vmem:[%s1 + $0x140] sm:$0x1]
    %v846 = vlaneseq
    %v847 = vshrl.u32 %v846, 7
    %v848 = vsub.s32 0, %v847
    %v849 = vrot.slane %v845, %v848
    %v850 = vadd.f32 %v843, %v849
    %v851 = vadd.f32 %v844, %v849
    %v852 = vld [vmem:[%s1 + $0x148] sm:$0x1]
    %v853 = vld [vmem:[%s1 + $0x150] sm:$0x1]
    %v854 = vsel %vm255, %v850, 0.0
    %855 = vadd.xlane.f32.xlu0 %v854
    %v856 = vpop.xlane.xlu0 %855
    %v857 = vsel %vm259, %v851, 0.0
    %858 = vadd.xlane.f32.xlu0 %v857
    %v859 = vpop.xlane.xlu0 %858
    %v860 = vmul.f32 %v856, %v263
    %v861 = vmul.f32 %v859, %v263
    %v862 = vsub.f32 %v850, %v860
    %v863 = vsub.f32 %v851, %v861
    %v864 = vmul.f32 %v862, %v862
    %v865 = vmul.f32 %v863, %v863
    %v866 = vsel %vm255, %v864, 0.0
    %867 = vadd.xlane.f32.xlu0 %v866
    %v868 = vpop.xlane.xlu0 %867
    %v869 = vsel %vm259, %v865, 0.0
    %870 = vadd.xlane.f32.xlu0 %v869
    %v871 = vpop.xlane.xlu0 %870
    %v872 = vmul.f32 %v868, %v263
    %v873 = vmul.f32 %v871, %v263
    %v874 = vadd.f32 %v872, 1e-06
    %v875 = vadd.f32 %v873, 1e-06
    %v876 = vrsqrt.pop %v874
    %v877 = vrsqrt.pop %v875
    %v878 = vmul.f32 %v862, %v876
    %v879 = vmul.f32 %v863, %v877
    %v880 = vlaneseq
    %v881 = vshrl.u32 %v880, 7
    %v882 = vsub.s32 0, %v881
    %v883 = vrot.slane %v852, %v882
    %v884 = vmul.f32 %v878, %v883
    %v885 = vmul.f32 %v879, %v883
    %v886 = vlaneseq
    %v887 = vshrl.u32 %v886, 7
    %v888 = vsub.s32 0, %v887
    %v889 = vrot.slane %v853, %v888
    %v890 = vadd.f32 %v884, %v889
    %v891 = vadd.f32 %v885, %v889
    %v892 = vld [vmem:[%s2 + $0x28] sm:$0xff]
    %v893 = vld [vmem:[%s2 + $0x30] sm:$0xff]
    %v894 = vld [vmem:[%s2 + $0x38] sm:$0xff]
    %v895 = vld [vmem:[%s2 + $0x40] sm:$0xff]
    %v896 = vld [vmem:[%s2 + $0x48] sm:$0x1]
    %v897 = vlaneseq
    %v898 = vshrl.u32 %v897, 7
    %v899 = vsub.s32 0, %v898
    %v900 = vrot.slane %v896, %v899
    %v902 = vsel %vm255, %v890, 0
    %v905 = vsel %vm255, %v891, 0
    %907 = vmatprep.subr.mxu0 0.0
    %908 = vmatpush1.msra.mxu0 %v892
    %909 = vmatprep.subr.mxu0 0.0
    %910 = vmatpush1.msra.mxu0 %v893
    %911 = vmatprep.subr.mxu0 0.0
    %912 = vmatpush1.msra.mxu0 %v894
    %913 = vmatprep.subr.mxu0 0.0
    %914 = vmatpush1.msra.mxu0 %v895
    %915 = vmatprep.subr.mxu0 0.0
    %916 = vmatpush1.msra.mxu0 0.0
    %917 = vmatprep.subr.mxu0 0.0
    %918 = vmatpush1.msra.mxu0 0.0
    %919 = vmatprep.subr.mxu0 0.0
    %920 = vmatpush1.msra.mxu0 0.0
    %921 = vmatprep.subr.mxu0 0.0
    %922 = vmatpush1.msra.mxu0 0.0
    %923 = vmatprep.subr.mxu0 0.0
    %924 = vmatpush1.msra.mxu0 0.0
    %925 = vmatprep.subr.mxu0 0.0
    %926 = vmatpush1.msra.mxu0 0.0
    %927 = vmatprep.subr.mxu0 0.0
    %928 = vmatpush1.msra.mxu0 0.0
    %929 = vmatprep.subr.mxu0 0.0
    %930 = vmatpush1.msra.mxu0 0.0
    %931 = vmatprep.subr.mxu0 0.0
    %932 = vmatpush1.msra.mxu0 0.0
    %933 = vmatprep.subr.mxu0 0.0
    %934 = vmatpush1.msra.mxu0 0.0
    %935 = vmatprep.subr.mxu0 0.0
    %936 = vmatpush1.msra.mxu0 0.0
    %937 = vmatprep.subr.mxu0 0.0
    %938 = vmatpush1.msra.mxu0 0.0
    %939 = vmatprep.subr.mxu0 0.0
    %940 = vmatpush1.msra.mxu0 0.0
    %941 = vmatprep.subr.mxu0 0.0
    %942 = vmatpush1.msra.mxu0 0.0
    %943 = vmatprep.subr.mxu0 0.0
    %944 = vmatpush1.msra.mxu0 0.0
    %945 = vmatprep.subr.mxu0 0.0
    %946 = vmatpush1.msra.mxu0 0.0
    %947 = vmatprep.subr.mxu0 0.0
    %948 = vmatpush1.msra.mxu0 0.0
    %949 = vmatprep.subr.mxu0 0.0
    %950 = vmatpush1.msra.mxu0 0.0
    %951 = vmatprep.subr.mxu0 0.0
    %952 = vmatpush1.msra.mxu0 0.0
    %953 = vmatprep.subr.mxu0 0.0
    %954 = vmatpush1.msra.mxu0 0.0
    %955 = vmatprep.subr.mxu0 0.0
    %956 = vmatpush1.msra.mxu0 0.0
    %957 = vmatprep.subr.mxu0 0.0
    %958 = vmatpush1.msra.mxu0 0.0
    %959 = vmatprep.subr.mxu0 0.0
    %960 = vmatpush1.msra.mxu0 0.0
    %961 = vmatprep.subr.mxu0 0.0
    %962 = vmatpush1.msra.mxu0 0.0
    %963 = vmatprep.subr.mxu0 0.0
    %964 = vmatpush1.msra.mxu0 0.0
    %965 = vmatprep.subr.mxu0 0.0
    %966 = vmatpush1.msra.mxu0 0.0
    %967 = vmatprep.subr.mxu0 0.0
    %968 = vmatpush1.msra.mxu0 0.0
    %969 = vmatprep.subr.mxu0 0.0
    %970 = vmatpush1.msra.mxu0 0.0
    %971 = vmatprep.mubr.f32.mxu0 0.0
    %972 = vmatmul.mubr.f32.gmra.mrb[0].mxu0 %v902
    %v973 = vpop.f32.mrb[0].mxu0
    %v974 = vadd.f32 %v900, %v973
    %v975 = vpop.f32.mrb[0].mxu0
    %976 = vmatprep.mubr.f32.mxu0 0.0
    %977 = vmatmul.mubr.f32.gmra.mrb[0].mxu0 %v905
    %v978 = vpop.f32.mrb[0].mxu0
    %v979 = vadd.f32 %v900, %v978
    %v980 = vpop.f32.mrb[0].mxu0
    %981 = vdwg.mxu0
    %v982 = vmul.f32 %v974, 0.5
    %v983 = vmul.f32 %v979, 0.5
    %v984 = vmul.f32 %v974, 0.70710677
    %v985 = vmul.f32 %v979, 0.70710677
    %v986 = verf.f32.pop %v984
    %v987 = verf.f32.pop %v985
    %v988 = vadd.f32 %v986, 1.0
    %v989 = vadd.f32 %v987, 1.0
    %v990 = vmul.f32 %v982, %v988
    %v991 = vmul.f32 %v983, %v989
    %v992 = vld [vmem:[%s1 + $0x158] sm:$0xff]
    %v993 = vld [vmem:[%s1 + $0x160] sm:$0xff]
    %v994 = vld [vmem:[%s1 + $0x168] sm:$0xff]
    %v995 = vld [vmem:[%s1 + $0x170] sm:$0xff]
    %v996 = vld [vmem:[%s1 + $0x178] sm:$0xff]
    %v997 = vld [vmem:[%s1 + $0x180] sm:$0xff]
    %v998 = vld [vmem:[%s1 + $0x188] sm:$0xff]
    %v999 = vld [vmem:[%s1 + $0x190] sm:$0xff]
    %v1000 = vld [vmem:[%s1 + $0x198] sm:$0xff]
    %v1001 = vld [vmem:[%s1 + $0x1a0] sm:$0xff]
    %v1002 = vld [vmem:[%s1 + $0x1a8] sm:$0xff]
    %v1003 = vld [vmem:[%s1 + $0x1b0] sm:$0xff]
    %vm1004 = vcmask 785408
    %v1006 = vsel %vm1004, %v990, 0
    %v1009 = vsel %vm1004, %v991, 0
    %1011 = vmatprep.subr.mxu0 0.0
    %1012 = vmatpush1.msra.mxu0 %v992
    %1013 = vmatprep.subr.mxu0 0.0
    %1014 = vmatpush1.msra.mxu0 %v993
    %1015 = vmatprep.subr.mxu0 0.0
    %1016 = vmatpush1.msra.mxu0 %v994
    %1017 = vmatprep.subr.mxu0 0.0
    %1018 = vmatpush1.msra.mxu0 %v995
    %1019 = vmatprep.subr.mxu0 0.0
    %1020 = vmatpush1.msra.mxu0 %v996
    %1021 = vmatprep.subr.mxu0 0.0
    %1022 = vmatpush1.msra.mxu0 %v997
    %1023 = vmatprep.subr.mxu0 0.0
    %1024 = vmatpush1.msra.mxu0 %v998
    %1025 = vmatprep.subr.mxu0 0.0
    %1026 = vmatpush1.msra.mxu0 %v999
    %1027 = vmatprep.subr.mxu0 0.0
    %1028 = vmatpush1.msra.mxu0 %v1000
    %1029 = vmatprep.subr.mxu0 0.0
    %1030 = vmatpush1.msra.mxu0 %v1001
    %1031 = vmatprep.subr.mxu0 0.0
    %1032 = vmatpush1.msra.mxu0 %v1002
    %1033 = vmatprep.subr.mxu0 0.0
    %1034 = vmatpush1.msra.mxu0 %v1003
    %1035 = vmatprep.subr.mxu0 0.0
    %1036 = vmatpush1.msra.mxu0 0.0
    %1037 = vmatprep.subr.mxu0 0.0
    %1038 = vmatpush1.msra.mxu0 0.0
    %1039 = vmatprep.subr.mxu0 0.0
    %1040 = vmatpush1.msra.mxu0 0.0
    %1041 = vmatprep.subr.mxu0 0.0
    %1042 = vmatpush1.msra.mxu0 0.0
    %1043 = vmatprep.subr.mxu0 0.0
    %1044 = vmatpush1.msra.mxu0 0.0
    %1045 = vmatprep.subr.mxu0 0.0
    %1046 = vmatpush1.msra.mxu0 0.0
    %1047 = vmatprep.subr.mxu0 0.0
    %1048 = vmatpush1.msra.mxu0 0.0
    %1049 = vmatprep.subr.mxu0 0.0
    %1050 = vmatpush1.msra.mxu0 0.0
    %1051 = vmatprep.subr.mxu0 0.0
    %1052 = vmatpush1.msra.mxu0 0.0
    %1053 = vmatprep.subr.mxu0 0.0
    %1054 = vmatpush1.msra.mxu0 0.0
    %1055 = vmatprep.subr.mxu0 0.0
    %1056 = vmatpush1.msra.mxu0 0.0
    %1057 = vmatprep.subr.mxu0 0.0
    %1058 = vmatpush1.msra.mxu0 0.0
    %1059 = vmatprep.subr.mxu0 0.0
    %1060 = vmatpush1.msra.mxu0 0.0
    %1061 = vmatprep.subr.mxu0 0.0
    %1062 = vmatpush1.msra.mxu0 0.0
    %1063 = vmatprep.subr.mxu0 0.0
    %1064 = vmatpush1.msra.mxu0 0.0
    %1065 = vmatprep.subr.mxu0 0.0
    %1066 = vmatpush1.msra.mxu0 0.0
    %1067 = vmatprep.subr.mxu0 0.0
    %1068 = vmatpush1.msra.mxu0 0.0
    %1069 = vmatprep.subr.mxu0 0.0
    %1070 = vmatpush1.msra.mxu0 0.0
    %1071 = vmatprep.subr.mxu0 0.0
    %1072 = vmatpush1.msra.mxu0 0.0
    %1073 = vmatprep.subr.mxu0 0.0
    %1074 = vmatpush1.msra.mxu0 0.0
    %1075 = vmatprep.mubr.f32.mxu0 0.0
    %1076 = vmatmul.mubr.f32.gmra.mrb[0].mxu0 %v1006
    %v1077 = vpop.f32.mrb[0].mxu0
    %v1078 = vadd.f32 0.0, %v1077
    %v1079 = vpop.f32.mrb[0].mxu0
    %1080 = vmatprep.mubr.f32.mxu0 0.0
    %1081 = vmatmul.mubr.f32.gmra.mrb[0].mxu0 %v1009
    %v1082 = vpop.f32.mrb[0].mxu0
    %v1083 = vadd.f32 0.0, %v1082
    %v1084 = vpop.f32.mrb[0].mxu0
    %1085 = vdwg.mxu0
    %v1086 = vadd.f32 %v850, %v1078
    %v1087 = vadd.f32 %v851, %v1083
    %v1088 = vld [vmem:[%s1 + $0x1b8] sm:$0x1]
    %v1089 = vlaneseq
    %v1090 = vshrl.u32 %v1089, 7
    %v1091 = vsub.s32 0, %v1090
    %v1092 = vrot.slane %v1088, %v1091
    %v1093 = vadd.f32 %v1086, %v1092
    %v1094 = vadd.f32 %v1087, %v1092
    %v1095 = vld [vmem:[%s1 + $0x1c0] sm:$0x1]
    %v1096 = vld [vmem:[%s1 + $0x1c8] sm:$0x1]
    %v1097 = vsel %vm255, %v1093, 0.0
    %1098 = vadd.xlane.f32.xlu0 %v1097
    %v1099 = vpop.xlane.xlu0 %1098
    %v1100 = vsel %vm259, %v1094, 0.0
    %1101 = vadd.xlane.f32.xlu0 %v1100
    %v1102 = vpop.xlane.xlu0 %1101
    %v1103 = vmul.f32 %v1099, %v263
    %v1104 = vmul.f32 %v1102, %v263
    %v1105 = vsub.f32 %v1093, %v1103
    %v1106 = vsub.f32 %v1094, %v1104
    %v1107 = vmul.f32 %v1105, %v1105
    %v1108 = vmul.f32 %v1106, %v1106
    %v1109 = vsel %vm255, %v1107, 0.0
    %1110 = vadd.xlane.f32.xlu0 %v1109
    %v1111 = vpop.xlane.xlu0 %1110
    %v1112 = vsel %vm259, %v1108, 0.0
    %1113 = vadd.xlane.f32.xlu0 %v1112
    %v1114 = vpop.xlane.xlu0 %1113
    %v1115 = vmul.f32 %v1111, %v263
    %v1116 = vmul.f32 %v1114, %v263
    %v1117 = vadd.f32 %v1115, 1e-06
    %v1118 = vadd.f32 %v1116, 1e-06
    %v1119 = vrsqrt.pop %v1117
    %v1120 = vrsqrt.pop %v1118
    %v1121 = vmul.f32 %v1105, %v1119
    %v1122 = vmul.f32 %v1106, %v1120
    %v1123 = vlaneseq
    %v1124 = vshrl.u32 %v1123, 7
    %v1125 = vsub.s32 0, %v1124
    %v1126 = vrot.slane %v1095, %v1125
    %v1127 = vmul.f32 %v1121, %v1126
    %v1128 = vmul.f32 %v1122, %v1126
    %v1129 = vlaneseq
    %v1130 = vshrl.u32 %v1129, 7
    %v1131 = vsub.s32 0, %v1130
    %v1132 = vrot.slane %v1096, %v1131
    %v1133 = vadd.f32 %v1127, %v1132
    %v1134 = vadd.f32 %v1128, %v1132
    %v1135 = vld [vmem:[%s2 + $0x50] sm:$0xff]
    %v1136 = vld [vmem:[%s2 + $0x58] sm:$0xff]
    %v1137 = vld [vmem:[%s2 + $0x60] sm:$0xff]
    %v1138 = vld [vmem:[%s2 + $0x68] sm:$0xff]
    %v1139 = vld [vmem:[%s2 + $0x70] sm:$0x1]
    %v1140 = vlaneseq
    %v1141 = vshrl.u32 %v1140, 7
    %v1142 = vsub.s32 0, %v1141
    %v1143 = vrot.slane %v1139, %v1142
    %v1145 = vsel %vm255, %v1133, 0
    %v1148 = vsel %vm255, %v1134, 0
    %1150 = vmatprep.subr.mxu0 0.0
    %1151 = vmatpush1.msra.mxu0 %v1135
    %1152 = vmatprep.subr.mxu0 0.0
    %1153 = vmatpush1.msra.mxu0 %v1136
    %1154 = vmatprep.subr.mxu0 0.0
    %1155 = vmatpush1.msra.mxu0 %v1137
    %1156 = vmatprep.subr.mxu0 0.0
    %1157 = vmatpush1.msra.mxu0 %v1138
    %1158 = vmatprep.subr.mxu0 0.0
    %1159 = vmatpush1.msra.mxu0 0.0
    %1160 = vmatprep.subr.mxu0 0.0
    %1161 = vmatpush1.msra.mxu0 0.0
    %1162 = vmatprep.subr.mxu0 0.0
    %1163 = vmatpush1.msra.mxu0 0.0
    %1164 = vmatprep.subr.mxu0 0.0
    %1165 = vmatpush1.msra.mxu0 0.0
    %1166 = vmatprep.subr.mxu0 0.0
    %1167 = vmatpush1.msra.mxu0 0.0
    %1168 = vmatprep.subr.mxu0 0.0
    %1169 = vmatpush1.msra.mxu0 0.0
    %1170 = vmatprep.subr.mxu0 0.0
    %1171 = vmatpush1.msra.mxu0 0.0
    %1172 = vmatprep.subr.mxu0 0.0
    %1173 = vmatpush1.msra.mxu0 0.0
    %1174 = vmatprep.subr.mxu0 0.0
    %1175 = vmatpush1.msra.mxu0 0.0
    %1176 = vmatprep.subr.mxu0 0.0
    %1177 = vmatpush1.msra.mxu0 0.0
    %1178 = vmatprep.subr.mxu0 0.0
    %1179 = vmatpush1.msra.mxu0 0.0
    %1180 = vmatprep.subr.mxu0 0.0
    %1181 = vmatpush1.msra.mxu0 0.0
    %1182 = vmatprep.subr.mxu0 0.0
    %1183 = vmatpush1.msra.mxu0 0.0
    %1184 = vmatprep.subr.mxu0 0.0
    %1185 = vmatpush1.msra.mxu0 0.0
    %1186 = vmatprep.subr.mxu0 0.0
    %1187 = vmatpush1.msra.mxu0 0.0
    %1188 = vmatprep.subr.mxu0 0.0
    %1189 = vmatpush1.msra.mxu0 0.0
    %1190 = vmatprep.subr.mxu0 0.0
    %1191 = vmatpush1.msra.mxu0 0.0
    %1192 = vmatprep.subr.mxu0 0.0
    %1193 = vmatpush1.msra.mxu0 0.0
    %1194 = vmatprep.subr.mxu0 0.0
    %1195 = vmatpush1.msra.mxu0 0.0
    %1196 = vmatprep.subr.mxu0 0.0
    %1197 = vmatpush1.msra.mxu0 0.0
    %1198 = vmatprep.subr.mxu0 0.0
    %1199 = vmatpush1.msra.mxu0 0.0
    %1200 = vmatprep.subr.mxu0 0.0
    %1201 = vmatpush1.msra.mxu0 0.0
    %1202 = vmatprep.subr.mxu0 0.0
    %1203 = vmatpush1.msra.mxu0 0.0
    %1204 = vmatprep.subr.mxu0 0.0
    %1205 = vmatpush1.msra.mxu0 0.0
    %1206 = vmatprep.subr.mxu0 0.0
    %1207 = vmatpush1.msra.mxu0 0.0
    %1208 = vmatprep.subr.mxu0 0.0
    %1209 = vmatpush1.msra.mxu0 0.0
    %1210 = vmatprep.subr.mxu0 0.0
    %1211 = vmatpush1.msra.mxu0 0.0
    %1212 = vmatprep.subr.mxu0 0.0
    %1213 = vmatpush1.msra.mxu0 0.0
    %1214 = vmatprep.mubr.f32.mxu0 0.0
    %1215 = vmatmul.mubr.f32.gmra.mrb[0].mxu0 %v1145
    %v1216 = vpop.f32.mrb[0].mxu0
    %v1217 = vadd.f32 %v1143, %v1216
    %v1218 = vpop.f32.mrb[0].mxu0
    %1219 = vmatprep.mubr.f32.mxu0 0.0
    %1220 = vmatmul.mubr.f32.gmra.mrb[0].mxu0 %v1148
    %v1221 = vpop.f32.mrb[0].mxu0
    %v1222 = vadd.f32 %v1143, %v1221
    %v1223 = vpop.f32.mrb[0].mxu0
    %1224 = vdwg.mxu0
    %v1227 = vrot.slane %v1217, 6
    %v1228 = vrot.slane %v1222, 6
    %v1229 = vsel %vm388, %v1227, %v1228
    %1230 = vrot.lane.b32.xlu0 %v1227, 104
    %v1231 = vpop.permute.xlu0 %1230
    %1232 = vrot.lane.b32.xlu0 %v1229, 104
    %v1233 = vpop.permute.xlu0 %1232
    %v1236 = vrot.slane %v1217, 4
    %v1237 = vrot.slane %v1222, 4
    %v1238 = vsel %vm398, %v1236, %v1237
    %1239 = vrot.lane.b32.xlu0 %v1236, 80
    %v1240 = vpop.permute.xlu0 %1239
    %1241 = vrot.lane.b32.xlu0 %v1238, 80
    %v1242 = vpop.permute.xlu0 %1241
    %v1245 = vrot.slane %v1217, 2
    %v1246 = vrot.slane %v1222, 2
    %v1247 = vsel %vm408, %v1245, %v1246
    %1248 = vrot.lane.b32.xlu0 %v1245, 56
    %v1249 = vpop.permute.xlu0 %1248
    %1250 = vrot.lane.b32.xlu0 %v1247, 56
    %v1251 = vpop.permute.xlu0 %1250
    %v1253 = vsel %vm388, %v1222, %v1231
    %v1254 = vsel %vm398, %v1233, %v1240
    %v1255 = vsel %vm408, %v1242, %v1249
    %1259 = vrot.lane.b32.xlu0 %v1217, 120
    %v1260 = vpop.permute.xlu0 %1259
    %1261 = vrot.lane.b32.xlu0 %v1253, 120
    %v1262 = vpop.permute.xlu0 %1261
    %1263 = vrot.lane.b32.xlu0 %v1254, 120
    %v1264 = vpop.permute.xlu0 %1263
    %1265 = vrot.lane.b32.xlu0 %v1255, 120
    %v1266 = vpop.permute.xlu0 %1265
    %1267 = vrot.lane.b32.xlu0 %v1251, 120
    %v1268 = vpop.permute.xlu0 %1267
    %v1269 = vsel %vm60, %v1217, 0
    %v1271 = vsel %vm60, %v1253, 0
    %v1273 = vsel %vm60, %v1254, 0
    %v1275 = vsel %vm60, %v1255, 0
    %v1277 = vsel %vm60, %v1251, 0
    %v1279 = vsel %vm60, %v1260, 0
    %v1281 = vsel %vm60, %v1262, 0
    %v1283 = vsel %vm60, %v1264, 0
    %v1285 = vsel %vm60, %v1266, 0
    %v1287 = vsel %vm60, %v1268, 0
    %1289 = vmatprep.subr.mxu0 0.0
    %1290 = vmatpush1.xpose.msra.mxu0 %v1279
    %1291 = vmatprep.subr.mxu0 0.0
    %1292 = vmatpush1.xpose.msra.mxu0 %v1281
    %1293 = vmatprep.subr.mxu0 0.0
    %1294 = vmatpush1.xpose.msra.mxu0 %v1283
    %1295 = vmatprep.subr.mxu0 0.0
    %1296 = vmatpush1.xpose.msra.mxu0 %v1285
    %1297 = vmatprep.subr.mxu0 0.0
    %1298 = vmatpush1.xpose.msra.mxu0 %v1287
    %1299 = vmatprep.subr.mxu0 0.0
    %1300 = vmatpush1.xpose.msra.mxu0 0.0
    %1301 = vmatprep.subr.mxu0 0.0
    %1302 = vmatpush1.xpose.msra.mxu0 0.0
    %1303 = vmatprep.subr.mxu0 0.0
    %1304 = vmatpush1.xpose.msra.mxu0 0.0
    %1305 = vmatprep.subr.mxu0 0.0
    %1306 = vmatpush1.xpose.msra.mxu0 0.0
    %1307 = vmatprep.subr.mxu0 0.0
    %1308 = vmatpush1.xpose.msra.mxu0 0.0
    %1309 = vmatprep.subr.mxu0 0.0
    %1310 = vmatpush1.xpose.msra.mxu0 0.0
    %1311 = vmatprep.subr.mxu0 0.0
    %1312 = vmatpush1.xpose.msra.mxu0 0.0
    %1313 = vmatprep.subr.mxu0 0.0
    %1314 = vmatpush1.xpose.msra.mxu0 0.0
    %1315 = vmatprep.subr.mxu0 0.0
    %1316 = vmatpush1.xpose.msra.mxu0 0.0
    %1317 = vmatprep.subr.mxu0 0.0
    %1318 = vmatpush1.xpose.msra.mxu0 0.0
    %1319 = vmatprep.subr.mxu0 0.0
    %1320 = vmatpush1.xpose.msra.mxu0 0.0
    %1321 = vmatprep.subr.mxu0 0.0
    %1322 = vmatpush1.xpose.msra.mxu0 0.0
    %1323 = vmatprep.subr.mxu0 0.0
    %1324 = vmatpush1.xpose.msra.mxu0 0.0
    %1325 = vmatprep.subr.mxu0 0.0
    %1326 = vmatpush1.xpose.msra.mxu0 0.0
    %1327 = vmatprep.subr.mxu0 0.0
    %1328 = vmatpush1.xpose.msra.mxu0 0.0
    %1329 = vmatprep.subr.mxu0 0.0
    %1330 = vmatpush1.xpose.msra.mxu0 0.0
    %1331 = vmatprep.subr.mxu0 0.0
    %1332 = vmatpush1.xpose.msra.mxu0 0.0
    %1333 = vmatprep.subr.mxu0 0.0
    %1334 = vmatpush1.xpose.msra.mxu0 0.0
    %1335 = vmatprep.subr.mxu0 0.0
    %1336 = vmatpush1.xpose.msra.mxu0 0.0
    %1337 = vmatprep.subr.mxu0 0.0
    %1338 = vmatpush1.xpose.msra.mxu0 0.0
    %1339 = vmatprep.subr.mxu0 0.0
    %1340 = vmatpush1.xpose.msra.mxu0 0.0
    %1341 = vmatprep.subr.mxu0 0.0
    %1342 = vmatpush1.xpose.msra.mxu0 0.0
    %1343 = vmatprep.subr.mxu0 0.0
    %1344 = vmatpush1.xpose.msra.mxu0 0.0
    %1345 = vmatprep.subr.mxu0 0.0
    %1346 = vmatpush1.xpose.msra.mxu0 0.0
    %1347 = vmatprep.subr.mxu0 0.0
    %1348 = vmatpush1.xpose.msra.mxu0 0.0
    %1349 = vmatprep.subr.mxu0 0.0
    %1350 = vmatpush1.xpose.msra.mxu0 0.0
    %1351 = vmatprep.subr.mxu0 0.0
    %1352 = vmatpush1.xpose.msra.mxu0 0.0
    %1353 = vmatprep.mubr.f32.mxu0 0.0
    %1354 = vmatmul.mubr.f32.gmra.mrb[0].mxu0 %v1269
    %v1355 = vpop.f32.mrb[0].mxu0
    %v1356 = vadd.f32 %v248, %v1355
    %v1357 = vpop.f32.mrb[0].mxu0
    %1358 = vmatprep.mubr.f32.mxu0 0.0
    %1359 = vmatmul.mubr.f32.gmra.mrb[0].mxu0 %v1271
    %v1360 = vpop.f32.mrb[0].mxu0
    %v1361 = vadd.f32 %v249, %v1360
    %v1362 = vpop.f32.mrb[0].mxu0
    %1363 = vmatprep.mubr.f32.mxu0 0.0
    %1364 = vmatmul.mubr.f32.gmra.mrb[0].mxu0 %v1273
    %v1365 = vpop.f32.mrb[0].mxu0
    %v1366 = vadd.f32 %v250, %v1365
    %v1367 = vpop.f32.mrb[0].mxu0
    %1368 = vmatprep.mubr.f32.mxu0 0.0
    %1369 = vmatmul.mubr.f32.gmra.mrb[0].mxu0 %v1275
    %v1370 = vpop.f32.mrb[0].mxu0
    %v1371 = vadd.f32 %v251, %v1370
    %v1372 = vpop.f32.mrb[0].mxu0
    %1373 = vmatprep.mubr.f32.mxu0 0.0
    %1374 = vmatmul.mubr.f32.gmra.mrb[0].mxu0 %v1277
    %v1375 = vpop.f32.mrb[0].mxu0
    %v1376 = vadd.f32 %v252, %v1375
    %v1377 = vpop.f32.mrb[0].mxu0
    %1378 = vdwg.mxu0
    %v1379 = vsel %vm543, %v1356, -inf
    %1380 = vmax.xlane.f32.xlu0 %v1379
    %v1381 = vpop.xlane.xlu0 %1380
    %v1382 = vsel %vm543, %v1361, -inf
    %1383 = vmax.xlane.f32.xlu0 %v1382
    %v1384 = vpop.xlane.xlu0 %1383
    %v1385 = vsel %vm543, %v1366, -inf
    %1386 = vmax.xlane.f32.xlu0 %v1385
    %v1387 = vpop.xlane.xlu0 %1386
    %v1388 = vsel %vm543, %v1371, -inf
    %1389 = vmax.xlane.f32.xlu0 %v1388
    %v1390 = vpop.xlane.xlu0 %1389
    %v1391 = vsel %vm543, %v1376, -inf
    %1392 = vmax.xlane.f32.xlu0 %v1391
    %v1393 = vpop.xlane.xlu0 %1392
    %v1394 = vsub.f32 %v1356, %v1381
    %v1395 = vsub.f32 %v1361, %v1384
    %v1396 = vsub.f32 %v1366, %v1387
    %v1397 = vsub.f32 %v1371, %v1390
    %v1398 = vsub.f32 %v1376, %v1393
    %v1399 = vmul.f32 %v1394, 1.442695
    %v1400 = vpow.pop %v1399
    %v1401 = vmul.f32 %v1395, 1.442695
    %v1402 = vpow.pop %v1401
    %v1403 = vmul.f32 %v1396, 1.442695
    %v1404 = vpow.pop %v1403
    %v1405 = vmul.f32 %v1397, 1.442695
    %v1406 = vpow.pop %v1405
    %v1407 = vmul.f32 %v1398, 1.442695
    %v1408 = vpow.pop %v1407
    %v1409 = vsel %vm543, %v1400, 0.0
    %1410 = vadd.xlane.f32.xlu0 %v1409
    %v1411 = vpop.xlane.xlu0 %1410
    %v1412 = vsel %vm543, %v1402, 0.0
    %1413 = vadd.xlane.f32.xlu0 %v1412
    %v1414 = vpop.xlane.xlu0 %1413
    %v1415 = vsel %vm543, %v1404, 0.0
    %1416 = vadd.xlane.f32.xlu0 %v1415
    %v1417 = vpop.xlane.xlu0 %1416
    %v1418 = vsel %vm543, %v1406, 0.0
    %1419 = vadd.xlane.f32.xlu0 %v1418
    %v1420 = vpop.xlane.xlu0 %1419
    %v1421 = vsel %vm543, %v1408, 0.0
    %1422 = vadd.xlane.f32.xlu0 %v1421
    %v1423 = vpop.xlane.xlu0 %1422
    %v1424 = vrcp.pop %v1411
    %v1425 = vrcp.pop %v1414
    %v1426 = vrcp.pop %v1417
    %v1427 = vrcp.pop %v1420
    %v1428 = vrcp.pop %v1423
    %v1429 = vmul.f32 %v1400, %v1424
    %v1430 = vmul.f32 %v1402, %v1425
    %v1431 = vmul.f32 %v1404, %v1426
    %v1432 = vmul.f32 %v1406, %v1427
    %v1433 = vmul.f32 %v1408, %v1428
    %1434 = vrot.lane.b32.xlu0 %v1217, 112
    %v1435 = vpop.permute.xlu0 %1434
    %1436 = vrot.lane.b32.xlu0 %v1253, 112
    %v1437 = vpop.permute.xlu0 %1436
    %1438 = vrot.lane.b32.xlu0 %v1254, 112
    %v1439 = vpop.permute.xlu0 %1438
    %1440 = vrot.lane.b32.xlu0 %v1255, 112
    %v1441 = vpop.permute.xlu0 %1440
    %1442 = vrot.lane.b32.xlu0 %v1251, 112
    %v1443 = vpop.permute.xlu0 %1442
    %v1450 = vsel %vm543, %v1429, 0
    %v1453 = vsel %vm543, %v1430, 0
    %v1456 = vsel %vm543, %v1431, 0
    %v1459 = vsel %vm543, %v1432, 0
    %v1462 = vsel %vm543, %v1433, 0
    %1464 = vmatprep.subr.mxu0 0.0
    %1465 = vmatpush1.msra.mxu0 %v1435
    %1466 = vmatprep.subr.mxu0 0.0
    %1467 = vmatpush1.msra.mxu0 %v1437
    %1468 = vmatprep.subr.mxu0 0.0
    %1469 = vmatpush1.msra.mxu0 %v1439
    %1470 = vmatprep.subr.mxu0 0.0
    %1471 = vmatpush1.msra.mxu0 %v1441
    %1472 = vmatprep.subr.mxu0 0.0
    %1473 = vmatpush1.msra.mxu0 %v1443
    %1474 = vmatprep.subr.mxu0 0.0
    %1475 = vmatpush1.msra.mxu0 0.0
    %1476 = vmatprep.subr.mxu0 0.0
    %1477 = vmatpush1.msra.mxu0 0.0
    %1478 = vmatprep.subr.mxu0 0.0
    %1479 = vmatpush1.msra.mxu0 0.0
    %1480 = vmatprep.subr.mxu0 0.0
    %1481 = vmatpush1.msra.mxu0 0.0
    %1482 = vmatprep.subr.mxu0 0.0
    %1483 = vmatpush1.msra.mxu0 0.0
    %1484 = vmatprep.subr.mxu0 0.0
    %1485 = vmatpush1.msra.mxu0 0.0
    %1486 = vmatprep.subr.mxu0 0.0
    %1487 = vmatpush1.msra.mxu0 0.0
    %1488 = vmatprep.subr.mxu0 0.0
    %1489 = vmatpush1.msra.mxu0 0.0
    %1490 = vmatprep.subr.mxu0 0.0
    %1491 = vmatpush1.msra.mxu0 0.0
    %1492 = vmatprep.subr.mxu0 0.0
    %1493 = vmatpush1.msra.mxu0 0.0
    %1494 = vmatprep.subr.mxu0 0.0
    %1495 = vmatpush1.msra.mxu0 0.0
    %1496 = vmatprep.subr.mxu0 0.0
    %1497 = vmatpush1.msra.mxu0 0.0
    %1498 = vmatprep.subr.mxu0 0.0
    %1499 = vmatpush1.msra.mxu0 0.0
    %1500 = vmatprep.subr.mxu0 0.0
    %1501 = vmatpush1.msra.mxu0 0.0
    %1502 = vmatprep.subr.mxu0 0.0
    %1503 = vmatpush1.msra.mxu0 0.0
    %1504 = vmatprep.subr.mxu0 0.0
    %1505 = vmatpush1.msra.mxu0 0.0
    %1506 = vmatprep.subr.mxu0 0.0
    %1507 = vmatpush1.msra.mxu0 0.0
    %1508 = vmatprep.subr.mxu0 0.0
    %1509 = vmatpush1.msra.mxu0 0.0
    %1510 = vmatprep.subr.mxu0 0.0
    %1511 = vmatpush1.msra.mxu0 0.0
    %1512 = vmatprep.subr.mxu0 0.0
    %1513 = vmatpush1.msra.mxu0 0.0
    %1514 = vmatprep.subr.mxu0 0.0
    %1515 = vmatpush1.msra.mxu0 0.0
    %1516 = vmatprep.subr.mxu0 0.0
    %1517 = vmatpush1.msra.mxu0 0.0
    %1518 = vmatprep.subr.mxu0 0.0
    %1519 = vmatpush1.msra.mxu0 0.0
    %1520 = vmatprep.subr.mxu0 0.0
    %1521 = vmatpush1.msra.mxu0 0.0
    %1522 = vmatprep.subr.mxu0 0.0
    %1523 = vmatpush1.msra.mxu0 0.0
    %1524 = vmatprep.subr.mxu0 0.0
    %1525 = vmatpush1.msra.mxu0 0.0
    %1526 = vmatprep.subr.mxu0 0.0
    %1527 = vmatpush1.msra.mxu0 0.0
    %1528 = vmatprep.mubr.f32.mxu0 0.0
    %1529 = vmatmul.mubr.f32.gmra.mrb[0].mxu0 %v1450
    %v1530 = vpop.f32.mrb[0].mxu0
    %v1531 = vadd.f32 0.0, %v1530
    %v1532 = vpop.f32.mrb[0].mxu0
    %1533 = vmatprep.mubr.f32.mxu0 0.0
    %1534 = vmatmul.mubr.f32.gmra.mrb[0].mxu0 %v1453
    %v1535 = vpop.f32.mrb[0].mxu0
    %v1536 = vadd.f32 0.0, %v1535
    %v1537 = vpop.f32.mrb[0].mxu0
    %1538 = vmatprep.mubr.f32.mxu0 0.0
    %1539 = vmatmul.mubr.f32.gmra.mrb[0].mxu0 %v1456
    %v1540 = vpop.f32.mrb[0].mxu0
    %v1541 = vadd.f32 0.0, %v1540
    %v1542 = vpop.f32.mrb[0].mxu0
    %1543 = vmatprep.mubr.f32.mxu0 0.0
    %1544 = vmatmul.mubr.f32.gmra.mrb[0].mxu0 %v1459
    %v1545 = vpop.f32.mrb[0].mxu0
    %v1546 = vadd.f32 0.0, %v1545
    %v1547 = vpop.f32.mrb[0].mxu0
    %1548 = vmatprep.mubr.f32.mxu0 0.0
    %1549 = vmatmul.mubr.f32.gmra.mrb[0].mxu0 %v1462
    %v1550 = vpop.f32.mrb[0].mxu0
    %v1551 = vadd.f32 0.0, %v1550
    %v1552 = vpop.f32.mrb[0].mxu0
    %1553 = vdwg.mxu0
    %v1556 = vrot.slane %v1536, 2
    %v1557 = vrot.slane %v1541, 2
    %v1558 = vsel %vm408, %v1556, %v1557
    %1559 = vrot.lane.b32.xlu0 %v1558, 8
    %v1560 = vpop.permute.xlu0 %1559
    %1561 = vrot.lane.b32.xlu0 %v1557, 8
    %v1562 = vpop.permute.xlu0 %1561
    %v1566 = vrot.slane %v1541, 4
    %v1567 = vrot.slane %v1546, 4
    %v1568 = vsel %vm398, %v1566, %v1567
    %1569 = vrot.lane.b32.xlu0 %v1568, 16
    %v1570 = vpop.permute.xlu0 %1569
    %1571 = vrot.lane.b32.xlu0 %v1567, 16
    %v1572 = vpop.permute.xlu0 %1571
    %v1576 = vrot.slane %v1546, 6
    %v1577 = vrot.slane %v1551, 6
    %v1578 = vsel %vm388, %v1576, %v1577
    %1579 = vrot.lane.b32.xlu0 %v1578, 24
    %v1580 = vpop.permute.xlu0 %1579
    %1581 = vrot.lane.b32.xlu0 %v1577, 24
    %v1582 = vpop.permute.xlu0 %1581
    %v1585 = vsel %vm60, %v1531, %v1560
    %v1586 = vsel %vm60, %v1536, %v1562
    %v1587 = vsel %vm752, %v1585, %v1570
    %v1588 = vsel %vm752, %v1586, %v1572
    %v1589 = vsel %vm755, %v1587, %v1580
    %v1590 = vsel %vm755, %v1588, %v1582
    %v1591 = vld [vmem:[%s1 + $0x1d0] sm:$0xff]
    %v1592 = vld [vmem:[%s1 + $0x1d8] sm:$0xff]
    %v1593 = vld [vmem:[%s1 + $0x1e0] sm:$0xff]
    %v1594 = vld [vmem:[%s1 + $0x1e8] sm:$0xff]
    %v1596 = vsel %vm255, %v1589, 0
    %v1599 = vsel %vm255, %v1590, 0
    %1601 = vmatprep.subr.mxu0 0.0
    %1602 = vmatpush1.msra.mxu0 %v1591
    %1603 = vmatprep.subr.mxu0 0.0
    %1604 = vmatpush1.msra.mxu0 %v1592
    %1605 = vmatprep.subr.mxu0 0.0
    %1606 = vmatpush1.msra.mxu0 %v1593
    %1607 = vmatprep.subr.mxu0 0.0
    %1608 = vmatpush1.msra.mxu0 %v1594
    %1609 = vmatprep.subr.mxu0 0.0
    %1610 = vmatpush1.msra.mxu0 0.0
    %1611 = vmatprep.subr.mxu0 0.0
    %1612 = vmatpush1.msra.mxu0 0.0
    %1613 = vmatprep.subr.mxu0 0.0
    %1614 = vmatpush1.msra.mxu0 0.0
    %1615 = vmatprep.subr.mxu0 0.0
    %1616 = vmatpush1.msra.mxu0 0.0
    %1617 = vmatprep.subr.mxu0 0.0
    %1618 = vmatpush1.msra.mxu0 0.0
    %1619 = vmatprep.subr.mxu0 0.0
    %1620 = vmatpush1.msra.mxu0 0.0
    %1621 = vmatprep.subr.mxu0 0.0
    %1622 = vmatpush1.msra.mxu0 0.0
    %1623 = vmatprep.subr.mxu0 0.0
    %1624 = vmatpush1.msra.mxu0 0.0
    %1625 = vmatprep.subr.mxu0 0.0
    %1626 = vmatpush1.msra.mxu0 0.0
    %1627 = vmatprep.subr.mxu0 0.0
    %1628 = vmatpush1.msra.mxu0 0.0
    %1629 = vmatprep.subr.mxu0 0.0
    %1630 = vmatpush1.msra.mxu0 0.0
    %1631 = vmatprep.subr.mxu0 0.0
    %1632 = vmatpush1.msra.mxu0 0.0
    %1633 = vmatprep.subr.mxu0 0.0
    %1634 = vmatpush1.msra.mxu0 0.0
    %1635 = vmatprep.subr.mxu0 0.0
    %1636 = vmatpush1.msra.mxu0 0.0
    %1637 = vmatprep.subr.mxu0 0.0
    %1638 = vmatpush1.msra.mxu0 0.0
    %1639 = vmatprep.subr.mxu0 0.0
    %1640 = vmatpush1.msra.mxu0 0.0
    %1641 = vmatprep.subr.mxu0 0.0
    %1642 = vmatpush1.msra.mxu0 0.0
    %1643 = vmatprep.subr.mxu0 0.0
    %1644 = vmatpush1.msra.mxu0 0.0
    %1645 = vmatprep.subr.mxu0 0.0
    %1646 = vmatpush1.msra.mxu0 0.0
    %1647 = vmatprep.subr.mxu0 0.0
    %1648 = vmatpush1.msra.mxu0 0.0
    %1649 = vmatprep.subr.mxu0 0.0
    %1650 = vmatpush1.msra.mxu0 0.0
    %1651 = vmatprep.subr.mxu0 0.0
    %1652 = vmatpush1.msra.mxu0 0.0
    %1653 = vmatprep.subr.mxu0 0.0
    %1654 = vmatpush1.msra.mxu0 0.0
    %1655 = vmatprep.subr.mxu0 0.0
    %1656 = vmatpush1.msra.mxu0 0.0
    %1657 = vmatprep.subr.mxu0 0.0
    %1658 = vmatpush1.msra.mxu0 0.0
    %1659 = vmatprep.subr.mxu0 0.0
    %1660 = vmatpush1.msra.mxu0 0.0
    %1661 = vmatprep.subr.mxu0 0.0
    %1662 = vmatpush1.msra.mxu0 0.0
    %1663 = vmatprep.subr.mxu0 0.0
    %1664 = vmatpush1.msra.mxu0 0.0
    %1665 = vmatprep.mubr.f32.mxu0 0.0
    %1666 = vmatmul.mubr.f32.gmra.mrb[0].mxu0 %v1596
    %v1667 = vpop.f32.mrb[0].mxu0
    %v1668 = vadd.f32 0.0, %v1667
    %v1669 = vpop.f32.mrb[0].mxu0
    %1670 = vmatprep.mubr.f32.mxu0 0.0
    %1671 = vmatmul.mubr.f32.gmra.mrb[0].mxu0 %v1599
    %v1672 = vpop.f32.mrb[0].mxu0
    %v1673 = vadd.f32 0.0, %v1672
    %v1674 = vpop.f32.mrb[0].mxu0
    %1675 = vdwg.mxu0
    %v1676 = vadd.f32 %v1093, %v1668
    %v1677 = vadd.f32 %v1094, %v1673
    %v1678 = vld [vmem:[%s1 + $0x1f0] sm:$0x1]
    %v1679 = vlaneseq
    %v1680 = vshrl.u32 %v1679, 7
    %v1681 = vsub.s32 0, %v1680
    %v1682 = vrot.slane %v1678, %v1681
    %v1683 = vadd.f32 %v1676, %v1682
    %v1684 = vadd.f32 %v1677, %v1682
    %v1685 = vld [vmem:[%s1 + $0x1f8] sm:$0x1]
    %v1686 = vld [vmem:[%s1 + $0x200] sm:$0x1]
    %v1687 = vsel %vm255, %v1683, 0.0
    %1688 = vadd.xlane.f32.xlu0 %v1687
    %v1689 = vpop.xlane.xlu0 %1688
    %v1690 = vsel %vm259, %v1684, 0.0
    %1691 = vadd.xlane.f32.xlu0 %v1690
    %v1692 = vpop.xlane.xlu0 %1691
    %v1693 = vmul.f32 %v1689, %v263
    %v1694 = vmul.f32 %v1692, %v263
    %v1695 = vsub.f32 %v1683, %v1693
    %v1696 = vsub.f32 %v1684, %v1694
    %v1697 = vmul.f32 %v1695, %v1695
    %v1698 = vmul.f32 %v1696, %v1696
    %v1699 = vsel %vm255, %v1697, 0.0
    %1700 = vadd.xlane.f32.xlu0 %v1699
    %v1701 = vpop.xlane.xlu0 %1700
    %v1702 = vsel %vm259, %v1698, 0.0
    %1703 = vadd.xlane.f32.xlu0 %v1702
    %v1704 = vpop.xlane.xlu0 %1703
    %v1705 = vmul.f32 %v1701, %v263
    %v1706 = vmul.f32 %v1704, %v263
    %v1707 = vadd.f32 %v1705, 1e-06
    %v1708 = vadd.f32 %v1706, 1e-06
    %v1709 = vrsqrt.pop %v1707
    %v1710 = vrsqrt.pop %v1708
    %v1711 = vmul.f32 %v1695, %v1709
    %v1712 = vmul.f32 %v1696, %v1710
    %v1713 = vlaneseq
    %v1714 = vshrl.u32 %v1713, 7
    %v1715 = vsub.s32 0, %v1714
    %v1716 = vrot.slane %v1685, %v1715
    %v1717 = vmul.f32 %v1711, %v1716
    %v1718 = vmul.f32 %v1712, %v1716
    %v1719 = vlaneseq
    %v1720 = vshrl.u32 %v1719, 7
    %v1721 = vsub.s32 0, %v1720
    %v1722 = vrot.slane %v1686, %v1721
    %v1723 = vadd.f32 %v1717, %v1722
    %v1724 = vadd.f32 %v1718, %v1722
    %v1725 = vld [vmem:[%s2 + $0x78] sm:$0xff]
    %v1726 = vld [vmem:[%s2 + $0x80] sm:$0xff]
    %v1727 = vld [vmem:[%s2 + $0x88] sm:$0xff]
    %v1728 = vld [vmem:[%s2 + $0x90] sm:$0xff]
    %v1729 = vld [vmem:[%s2 + $0x98] sm:$0x1]
    %v1730 = vlaneseq
    %v1731 = vshrl.u32 %v1730, 7
    %v1732 = vsub.s32 0, %v1731
    %v1733 = vrot.slane %v1729, %v1732
    %v1735 = vsel %vm255, %v1723, 0
    %v1738 = vsel %vm255, %v1724, 0
    %1740 = vmatprep.subr.mxu0 0.0
    %1741 = vmatpush1.msra.mxu0 %v1725
    %1742 = vmatprep.subr.mxu0 0.0
    %1743 = vmatpush1.msra.mxu0 %v1726
    %1744 = vmatprep.subr.mxu0 0.0
    %1745 = vmatpush1.msra.mxu0 %v1727
    %1746 = vmatprep.subr.mxu0 0.0
    %1747 = vmatpush1.msra.mxu0 %v1728
    %1748 = vmatprep.subr.mxu0 0.0
    %1749 = vmatpush1.msra.mxu0 0.0
    %1750 = vmatprep.subr.mxu0 0.0
    %1751 = vmatpush1.msra.mxu0 0.0
    %1752 = vmatprep.subr.mxu0 0.0
    %1753 = vmatpush1.msra.mxu0 0.0
    %1754 = vmatprep.subr.mxu0 0.0
    %1755 = vmatpush1.msra.mxu0 0.0
    %1756 = vmatprep.subr.mxu0 0.0
    %1757 = vmatpush1.msra.mxu0 0.0
    %1758 = vmatprep.subr.mxu0 0.0
    %1759 = vmatpush1.msra.mxu0 0.0
    %1760 = vmatprep.subr.mxu0 0.0
    %1761 = vmatpush1.msra.mxu0 0.0
    %1762 = vmatprep.subr.mxu0 0.0
    %1763 = vmatpush1.msra.mxu0 0.0
    %1764 = vmatprep.subr.mxu0 0.0
    %1765 = vmatpush1.msra.mxu0 0.0
    %1766 = vmatprep.subr.mxu0 0.0
    %1767 = vmatpush1.msra.mxu0 0.0
    %1768 = vmatprep.subr.mxu0 0.0
    %1769 = vmatpush1.msra.mxu0 0.0
    %1770 = vmatprep.subr.mxu0 0.0
    %1771 = vmatpush1.msra.mxu0 0.0
    %1772 = vmatprep.subr.mxu0 0.0
    %1773 = vmatpush1.msra.mxu0 0.0
    %1774 = vmatprep.subr.mxu0 0.0
    %1775 = vmatpush1.msra.mxu0 0.0
    %1776 = vmatprep.subr.mxu0 0.0
    %1777 = vmatpush1.msra.mxu0 0.0
    %1778 = vmatprep.subr.mxu0 0.0
    %1779 = vmatpush1.msra.mxu0 0.0
    %1780 = vmatprep.subr.mxu0 0.0
    %1781 = vmatpush1.msra.mxu0 0.0
    %1782 = vmatprep.subr.mxu0 0.0
    %1783 = vmatpush1.msra.mxu0 0.0
    %1784 = vmatprep.subr.mxu0 0.0
    %1785 = vmatpush1.msra.mxu0 0.0
    %1786 = vmatprep.subr.mxu0 0.0
    %1787 = vmatpush1.msra.mxu0 0.0
    %1788 = vmatprep.subr.mxu0 0.0
    %1789 = vmatpush1.msra.mxu0 0.0
    %1790 = vmatprep.subr.mxu0 0.0
    %1791 = vmatpush1.msra.mxu0 0.0
    %1792 = vmatprep.subr.mxu0 0.0
    %1793 = vmatpush1.msra.mxu0 0.0
    %1794 = vmatprep.subr.mxu0 0.0
    %1795 = vmatpush1.msra.mxu0 0.0
    %1796 = vmatprep.subr.mxu0 0.0
    %1797 = vmatpush1.msra.mxu0 0.0
    %1798 = vmatprep.subr.mxu0 0.0
    %1799 = vmatpush1.msra.mxu0 0.0
    %1800 = vmatprep.subr.mxu0 0.0
    %1801 = vmatpush1.msra.mxu0 0.0
    %1802 = vmatprep.subr.mxu0 0.0
    %1803 = vmatpush1.msra.mxu0 0.0
    %1804 = vmatprep.mubr.f32.mxu0 0.0
    %1805 = vmatmul.mubr.f32.gmra.mrb[0].mxu0 %v1735
    %v1806 = vpop.f32.mrb[0].mxu0
    %v1807 = vadd.f32 %v1733, %v1806
    %v1808 = vpop.f32.mrb[0].mxu0
    %1809 = vmatprep.mubr.f32.mxu0 0.0
    %1810 = vmatmul.mubr.f32.gmra.mrb[0].mxu0 %v1738
    %v1811 = vpop.f32.mrb[0].mxu0
    %v1812 = vadd.f32 %v1733, %v1811
    %v1813 = vpop.f32.mrb[0].mxu0
    %1814 = vdwg.mxu0
    %v1815 = vmul.f32 %v1807, 0.5
    %v1816 = vmul.f32 %v1812, 0.5
    %v1817 = vmul.f32 %v1807, 0.70710677
    %v1818 = vmul.f32 %v1812, 0.70710677
    %v1819 = verf.f32.pop %v1817
    %v1820 = verf.f32.pop %v1818
    %v1821 = vadd.f32 %v1819, 1.0
    %v1822 = vadd.f32 %v1820, 1.0
    %v1823 = vmul.f32 %v1815, %v1821
    %v1824 = vmul.f32 %v1816, %v1822
    %v1825 = vld [vmem:[%s1 + $0x208] sm:$0xff]
    %v1826 = vld [vmem:[%s1 + $0x210] sm:$0xff]
    %v1827 = vld [vmem:[%s1 + $0x218] sm:$0xff]
    %v1828 = vld [vmem:[%s1 + $0x220] sm:$0xff]
    %v1829 = vld [vmem:[%s1 + $0x228] sm:$0xff]
    %v1830 = vld [vmem:[%s1 + $0x230] sm:$0xff]
    %v1831 = vld [vmem:[%s1 + $0x238] sm:$0xff]
    %v1832 = vld [vmem:[%s1 + $0x240] sm:$0xff]
    %v1833 = vld [vmem:[%s1 + $0x248] sm:$0xff]
    %v1834 = vld [vmem:[%s1 + $0x250] sm:$0xff]
    %v1835 = vld [vmem:[%s1 + $0x258] sm:$0xff]
    %v1836 = vld [vmem:[%s1 + $0x260] sm:$0xff]
    %v1838 = vsel %vm1004, %v1823, 0
    %v1841 = vsel %vm1004, %v1824, 0
    %1843 = vmatprep.subr.mxu0 0.0
    %1844 = vmatpush1.msra.mxu0 %v1825
    %1845 = vmatprep.subr.mxu0 0.0
    %1846 = vmatpush1.msra.mxu0 %v1826
    %1847 = vmatprep.subr.mxu0 0.0
    %1848 = vmatpush1.msra.mxu0 %v1827
    %1849 = vmatprep.subr.mxu0 0.0
    %1850 = vmatpush1.msra.mxu0 %v1828
    %1851 = vmatprep.subr.mxu0 0.0
    %1852 = vmatpush1.msra.mxu0 %v1829
    %1853 = vmatprep.subr.mxu0 0.0
    %1854 = vmatpush1.msra.mxu0 %v1830
    %1855 = vmatprep.subr.mxu0 0.0
    %1856 = vmatpush1.msra.mxu0 %v1831
    %1857 = vmatprep.subr.mxu0 0.0
    %1858 = vmatpush1.msra.mxu0 %v1832
    %1859 = vmatprep.subr.mxu0 0.0
    %1860 = vmatpush1.msra.mxu0 %v1833
    %1861 = vmatprep.subr.mxu0 0.0
    %1862 = vmatpush1.msra.mxu0 %v1834
    %1863 = vmatprep.subr.mxu0 0.0
    %1864 = vmatpush1.msra.mxu0 %v1835
    %1865 = vmatprep.subr.mxu0 0.0
    %1866 = vmatpush1.msra.mxu0 %v1836
    %1867 = vmatprep.subr.mxu0 0.0
    %1868 = vmatpush1.msra.mxu0 0.0
    %1869 = vmatprep.subr.mxu0 0.0
    %1870 = vmatpush1.msra.mxu0 0.0
    %1871 = vmatprep.subr.mxu0 0.0
    %1872 = vmatpush1.msra.mxu0 0.0
    %1873 = vmatprep.subr.mxu0 0.0
    %1874 = vmatpush1.msra.mxu0 0.0
    %1875 = vmatprep.subr.mxu0 0.0
    %1876 = vmatpush1.msra.mxu0 0.0
    %1877 = vmatprep.subr.mxu0 0.0
    %1878 = vmatpush1.msra.mxu0 0.0
    %1879 = vmatprep.subr.mxu0 0.0
    %1880 = vmatpush1.msra.mxu0 0.0
    %1881 = vmatprep.subr.mxu0 0.0
    %1882 = vmatpush1.msra.mxu0 0.0
    %1883 = vmatprep.subr.mxu0 0.0
    %1884 = vmatpush1.msra.mxu0 0.0
    %1885 = vmatprep.subr.mxu0 0.0
    %1886 = vmatpush1.msra.mxu0 0.0
    %1887 = vmatprep.subr.mxu0 0.0
    %1888 = vmatpush1.msra.mxu0 0.0
    %1889 = vmatprep.subr.mxu0 0.0
    %1890 = vmatpush1.msra.mxu0 0.0
    %1891 = vmatprep.subr.mxu0 0.0
    %1892 = vmatpush1.msra.mxu0 0.0
    %1893 = vmatprep.subr.mxu0 0.0
    %1894 = vmatpush1.msra.mxu0 0.0
    %1895 = vmatprep.subr.mxu0 0.0
    %1896 = vmatpush1.msra.mxu0 0.0
    %1897 = vmatprep.subr.mxu0 0.0
    %1898 = vmatpush1.msra.mxu0 0.0
    %1899 = vmatprep.subr.mxu0 0.0
    %1900 = vmatpush1.msra.mxu0 0.0
    %1901 = vmatprep.subr.mxu0 0.0
    %1902 = vmatpush1.msra.mxu0 0.0
    %1903 = vmatprep.subr.mxu0 0.0
    %1904 = vmatpush1.msra.mxu0 0.0
    %1905 = vmatprep.subr.mxu0 0.0
    %1906 = vmatpush1.msra.mxu0 0.0
    %1907 = vmatprep.mubr.f32.mxu0 0.0
    %1908 = vmatmul.mubr.f32.gmra.mrb[0].mxu0 %v1838
    %v1909 = vpop.f32.mrb[0].mxu0
    %v1910 = vadd.f32 0.0, %v1909
    %v1911 = vpop.f32.mrb[0].mxu0
    %1912 = vmatprep.mubr.f32.mxu0 0.0
    %1913 = vmatmul.mubr.f32.gmra.mrb[0].mxu0 %v1841
    %v1914 = vpop.f32.mrb[0].mxu0
    %v1915 = vpop.f32.mrb[0].mxu0
    %1916 = vdwg.mxu0
    %v1917 = vadd.f32 %v1683, %v1910
    %v1918 = vld [vmem:[%s1 + $0x268] sm:$0x1]
    %v1919 = vlaneseq
    %v1920 = vshrl.u32 %v1919, 7
    %v1921 = vsub.s32 0, %v1920
    %v1922 = vrot.slane %v1918, %v1921
    %v1923 = vadd.f32 %v1917, %v1922
    %v1925 = vrot.slane %v1923, 4
    %vm1927 = vcmask 1040384
    %v1928 = vsel %vm1927, %v1923, %v1925
    %v1929 = vld [vmem:[%s1 + $0x270] sm:$0x1]
    %v1930 = vld [vmem:[%s1 + $0x278] sm:$0x1]
    %v1931 = vsel %vm259, %v1928, 0.0
    %1932 = vadd.xlane.f32.xlu0 %v1931
    %v1933 = vpop.xlane.xlu0 %1932
    %v1934 = vmul.f32 %v1933, %v263
    %v1935 = vsub.f32 %v1928, %v1934
    %v1936 = vmul.f32 %v1935, %v1935
    %v1937 = vsel %vm259, %v1936, 0.0
    %1938 = vadd.xlane.f32.xlu0 %v1937
    %v1939 = vpop.xlane.xlu0 %1938
    %v1940 = vmul.f32 %v1939, %v263
    %v1941 = vadd.f32 %v1940, 1e-06
    %v1942 = vrsqrt.pop %v1941
    %v1943 = vmul.f32 %v1935, %v1942
    %v1944 = vlaneseq
    %v1945 = vshrl.u32 %v1944, 7
    %v1946 = vsub.s32 0, %v1945
    %v1947 = vrot.slane %v1929, %v1946
    %v1948 = vmul.f32 %v1943, %v1947
    %v1949 = vlaneseq
    %v1950 = vshrl.u32 %v1949, 7
    %v1951 = vsub.s32 0, %v1950
    %v1952 = vrot.slane %v1930, %v1951
    %v1953 = vadd.f32 %v1948, %v1952
    %v1954 = vld [vmem:[%s1 + $0x280] sm:$0xff]
    %v1955 = vld [vmem:[%s1 + $0x288] sm:$0xff]
    %v1956 = vld [vmem:[%s1 + $0x290] sm:$0xff]
    %v1957 = vld [vmem:[%s1 + $0x298] sm:$0xff]
    %v1958 = vld [vmem:[%s1 + $0x2a0] sm:$0x1]
    %v1959 = vlaneseq
    %v1960 = vshrl.u32 %v1959, 7
    %v1961 = vsub.s32 0, %v1960
    %v1962 = vrot.slane %v1958, %v1961
    %v1964 = vsel %vm255, %v1953, 0
    %1966 = vmatprep.subr.mxu0 0.0
    %1967 = vmatpush1.msra.mxu0 %v1954
    %1968 = vmatprep.subr.mxu0 0.0
    %1969 = vmatpush1.msra.mxu0 %v1955
    %1970 = vmatprep.subr.mxu0 0.0
    %1971 = vmatpush1.msra.mxu0 %v1956
    %1972 = vmatprep.subr.mxu0 0.0
    %1973 = vmatpush1.msra.mxu0 %v1957
    %1974 = vmatprep.subr.mxu0 0.0
    %1975 = vmatpush1.msra.mxu0 0.0
    %1976 = vmatprep.subr.mxu0 0.0
    %1977 = vmatpush1.msra.mxu0 0.0
    %1978 = vmatprep.subr.mxu0 0.0
    %1979 = vmatpush1.msra.mxu0 0.0
    %1980 = vmatprep.subr.mxu0 0.0
    %1981 = vmatpush1.msra.mxu0 0.0
    %1982 = vmatprep.subr.mxu0 0.0
    %1983 = vmatpush1.msra.mxu0 0.0
    %1984 = vmatprep.subr.mxu0 0.0
    %1985 = vmatpush1.msra.mxu0 0.0
    %1986 = vmatprep.subr.mxu0 0.0
    %1987 = vmatpush1.msra.mxu0 0.0
    %1988 = vmatprep.subr.mxu0 0.0
    %1989 = vmatpush1.msra.mxu0 0.0
    %1990 = vmatprep.subr.mxu0 0.0
    %1991 = vmatpush1.msra.mxu0 0.0
    %1992 = vmatprep.subr.mxu0 0.0
    %1993 = vmatpush1.msra.mxu0 0.0
    %1994 = vmatprep.subr.mxu0 0.0
    %1995 = vmatpush1.msra.mxu0 0.0
    %1996 = vmatprep.subr.mxu0 0.0
    %1997 = vmatpush1.msra.mxu0 0.0
    %1998 = vmatprep.subr.mxu0 0.0
    %1999 = vmatpush1.msra.mxu0 0.0
    %2000 = vmatprep.subr.mxu0 0.0
    %2001 = vmatpush1.msra.mxu0 0.0
    %2002 = vmatprep.subr.mxu0 0.0
    %2003 = vmatpush1.msra.mxu0 0.0
    %2004 = vmatprep.subr.mxu0 0.0
    %2005 = vmatpush1.msra.mxu0 0.0
    %2006 = vmatprep.subr.mxu0 0.0
    %2007 = vmatpush1.msra.mxu0 0.0
    %2008 = vmatprep.subr.mxu0 0.0
    %2009 = vmatpush1.msra.mxu0 0.0
    %2010 = vmatprep.subr.mxu0 0.0
    %2011 = vmatpush1.msra.mxu0 0.0
    %2012 = vmatprep.subr.mxu0 0.0
    %2013 = vmatpush1.msra.mxu0 0.0
    %2014 = vmatprep.subr.mxu0 0.0
    %2015 = vmatpush1.msra.mxu0 0.0
    %2016 = vmatprep.subr.mxu0 0.0
    %2017 = vmatpush1.msra.mxu0 0.0
    %2018 = vmatprep.subr.mxu0 0.0
    %2019 = vmatpush1.msra.mxu0 0.0
    %2020 = vmatprep.subr.mxu0 0.0
    %2021 = vmatpush1.msra.mxu0 0.0
    %2022 = vmatprep.subr.mxu0 0.0
    %2023 = vmatpush1.msra.mxu0 0.0
    %2024 = vmatprep.subr.mxu0 0.0
    %2025 = vmatpush1.msra.mxu0 0.0
    %2026 = vmatprep.subr.mxu0 0.0
    %2027 = vmatpush1.msra.mxu0 0.0
    %2028 = vmatprep.subr.mxu0 0.0
    %2029 = vmatpush1.msra.mxu0 0.0
    %2030 = vmatprep.mubr.f32.mxu0 0.0
    %2031 = vmatmul.mubr.f32.gmra.mrb[0].mxu0 %v1964
    %v2032 = vpop.f32.mrb[0].mxu0
    %v2033 = vadd.f32 %v1962, %v2032
    %v2034 = vpop.f32.mrb[0].mxu0
    %2035 = vdwg.mxu0
    %vm2036 = vcmask 74752
    %2037 = vst.msk [vmem:[#allocation2] sm:$0x3] %vm2036, %v2033
    // Predicated region
    $region14: #{vit_forward.1} parent=1 // pred_check
      _
    $region15: #{vit_forward.1} parent=1 // pred_check_branch
      %2039 = sbr.rel (0) target = $region17
    $region16: #{vit_forward.1} parent=1 // pred_region
      %s2041 = ssub.s32 32, 32
      %2042 = vsyncadd [#allocation3], %s2041
      %s2044 = sshll.u32 [#allocation2], 4
      %s2045 = int_to_ptr.vmem [resolvable:$true] %s2044
      %2047 = dma.vmem_to_hbm [thread:$0]  %s2045, 32, %s3, [#allocation3]
    $region17: #{vit_forward.1} parent=1 // pred_fallthru
      _
    // Predicated region
    $region18: #{vit_forward.1} parent=1 // pred_check
      _
    $region19: #{vit_forward.1} parent=1 // pred_check_branch
      %2049 = sbr.rel (0) target = $region21
    $region20: #{vit_forward.1} parent=1 // pred_region
      %2050 = dma.done [#allocation3], 32
    $region21: #{vit_forward.1} parent=1 // pred_fallthru
      _
    %2051 = vsyncpa [#allocation3], 1

</llo_original>
